<compile_context>
chip_gen: v7x
topology: tpu7x:2x2x1
jax: 0.10.0
libtpu: 0.0.40
codegen_flags: <defaults>
</compile_context>

<pallas_src>
import math

import jax
import jax.numpy as jnp
from jax.experimental import pallas as pl
from jax.experimental.pallas import tpu as pltpu


# ----------------------------- fused LSTM + head kernel -----------------------------
def lstm_fused_kernel(len_ref,                                   # SMEM (B,) int32
                      emb_ref, wih_ref, whh_ref, bgate_ref,      # inputs (VMEM)
                      w1_ref, b1_ref, w2_ref, b2_ref,
                      out_ref,                                   # (B, T, O) f32
                      gx_ref, h_ref):                            # VMEM scratch
    T, B, H = h_ref.shape
    _ = out_ref.shape[2]

    # ---- Hoisted input projection: one big MXU matmul over all (t, b) rows ----
    # emb_ref rows are time-major flattened: row r = t * B + b.
    gx_ref[...] = (
        jnp.dot(emb_ref[...], wih_ref[...], preferred_element_type=jnp.float32)
        + bgate_ref[...])                                        # (T*B, 4H) f32

    # ---- Serial recurrence: only h @ W_hh^T per step ----
    whh = whh_ref[...]                                           # (H, 4H) bf16, resident

    def step(t, carry):
        h, c = carry                                             # (B, H) f32
        gates = gx_ref[pl.ds(t * B, B), :] + jnp.dot(
            h.astype(jnp.bfloat16), whh, preferred_element_type=jnp.float32)
        # PyTorch gate order i, f, g, o (sigmoid/tanh go to the EUP).
        i_g = jax.nn.sigmoid(gates[:, 0 * H:1 * H])
        f_g = jax.nn.sigmoid(gates[:, 1 * H:2 * H])
        g_g = jnp.tanh(gates[:, 2 * H:3 * H])
        o_g = jax.nn.sigmoid(gates[:, 3 * H:4 * H])
        c_new = f_g * c + i_g * g_g
        h_new = o_g * jnp.tanh(c_new)
        h_ref[t] = h_new                                         # (B, H) slice of (T, B, H)
        return h_new, c_new

    h0 = jnp.zeros((B, H), jnp.float32)
    jax.lax.fori_loop(0, T, step, (h0, h0), unroll=True)

    # ---- Epilogue: pad mask (from SMEM lengths) + fused MLP head, batch-first output ----
    w1 = w1_ref[...]
    b1 = b1_ref[...]
    w2 = w2_ref[...]
    b2 = b2_ref[...]
    t_iota = jax.lax.broadcasted_iota(jnp.int32, (T, 1), 0)
    for b in range(B):                                           # B is small and static
        valid = t_iota < len_ref[b]                              # (T, 1) bool
        h_b = jnp.where(valid, h_ref[:, b, :], 0.0).astype(jnp.bfloat16)
        h1 = jnp.dot(h_b, w1, preferred_element_type=jnp.float32) + b1
        h1 = jnp.maximum(h1, 0.0).astype(jnp.bfloat16)
        out_ref[b] = jnp.dot(h1, w2, preferred_element_type=jnp.float32) + b2


def run_lstm_fused(lengths, emb_flat, w_ih_t, w_hh_t, b_gates, w1_t, b1, w2_t, b2,
                   *, t_out, batch):
    TB, E = emb_flat.shape
    H = w_hh_t.shape[0]
    O = w2_t.shape[1]

    def full(shape):
        n = len(shape)

        def idx(i, lens):            # index_map gets (grid idx, *scalar-prefetch refs)
            return (0,) * n

        return pl.BlockSpec(shape, idx)

    return pl.pallas_call(
        lstm_fused_kernel,
        out_shape=jax.ShapeDtypeStruct((batch, t_out, O), jnp.float32),
        grid_spec=pltpu.PrefetchScalarGridSpec(
            num_scalar_prefetch=1,                       # lengths -> SMEM
            grid=(1,),
            in_specs=[
                full((TB, E)),                           # time-major flattened embeddings (bf16)
                full((E, 4 * H)),                        # W_ih^T (bf16)
                full((H, 4 * H)),                        # W_hh^T (bf16)
                full((1, 4 * H)),                        # b_ih + b_hh (f32)
                full((H, H)),                            # W1^T (bf16)
                full((1, H)),                            # b1 (f32)
                full((H, O)),                            # W2^T (bf16)
                full((1, O)),                            # b2 (f32)
            ],
            out_specs=full((batch, t_out, O)),
            scratch_shapes=[
                pltpu.VMEM((TB, 4 * H), jnp.float32),        # hoisted gate projections
                pltpu.VMEM((t_out, batch, H), jnp.float32),  # per-step hidden states
            ],
        ),
        compiler_params=pltpu.CompilerParams(dimension_semantics=("arbitrary",)),
    )(lengths, emb_flat, w_ih_t, w_hh_t, b_gates, w1_t, b1, w2_t, b2)


# ----------------------------- model wrapper -----------------------------
def init_params(key, vocab_size, embedding_dim, hidden_dim, output_dim):
    ks = jax.random.split(key, 9)
    s = 1.0 / math.sqrt(hidden_dim)
    u = lambda k, shape, sc: jax.random.uniform(k, shape, jnp.float32, -sc, sc)
    return dict(
        embedding=jax.random.normal(ks[0], (vocab_size, embedding_dim), jnp.float32),
        w_ih=u(ks[1], (4 * hidden_dim, embedding_dim), s),
        w_hh=u(ks[2], (4 * hidden_dim, hidden_dim), s),
        b_ih=u(ks[3], (4 * hidden_dim,), s),
        b_hh=u(ks[4], (4 * hidden_dim,), s),
        w1=u(ks[5], (hidden_dim, hidden_dim), s),
        b1=u(ks[6], (hidden_dim,), s),
        w2=u(ks[7], (output_dim, hidden_dim), s),
        b2=u(ks[8], (output_dim,), s),
    )


def lstm_model_forward(params, token_ids, lengths, t_out):
    B, _ = token_ids.shape
    # Glue: embedding gather, done directly in time-major flattened order
    # (row r = t * B + b), truncated to T_out = max(lengths); the kernel never
    # has to reshape or transpose activations.
    ids_tm_flat = token_ids.T[:t_out].reshape(-1)                      # (T_out*B,)
    emb_flat = jnp.take(params["embedding"], ids_tm_flat, axis=0)
    emb_flat = emb_flat.astype(jnp.bfloat16)                           # MXU operand dtype

    lengths_i32 = lengths.astype(jnp.int32)                            # (B,) -> SMEM
    w_ih_t = params["w_ih"].T.astype(jnp.bfloat16)                     # (E, 4H)
    w_hh_t = params["w_hh"].T.astype(jnp.bfloat16)                     # (H, 4H)
    b_gates = (params["b_ih"] + params["b_hh"])[None, :]               # (1, 4H) f32
    w1_t = params["w1"].T.astype(jnp.bfloat16)                         # (H, H)
    b1 = params["b1"][None, :]                                         # (1, H) f32
    w2_t = params["w2"].T.astype(jnp.bfloat16)                         # (H, O)
    b2 = params["b2"][None, :]                                         # (1, O) f32

    return run_lstm_fused(lengths_i32, emb_flat, w_ih_t, w_hh_t, b_gates,
                          w1_t, b1, w2_t, b2, t_out=t_out, batch=B)


# ----------------------------- pure-JAX f32 reference -----------------------------
def reference_forward(params, token_ids, lengths, t_out):
    emb = jnp.take(params["embedding"], token_ids, axis=0).astype(jnp.float32)
    B, T, _ = emb.shape
    H = params["w_hh"].shape[1]

    def step(carry, x_t):
        h, c = carry
        gates = x_t @ params["w_ih"].T + h @ params["w_hh"].T + params["b_ih"] + params["b_hh"]
        i_g = jax.nn.sigmoid(gates[:, 0 * H:1 * H])
        f_g = jax.nn.sigmoid(gates[:, 1 * H:2 * H])
        g_g = jnp.tanh(gates[:, 2 * H:3 * H])
        o_g = jax.nn.sigmoid(gates[:, 3 * H:4 * H])
        c = f_g * c + i_g * g_g
        h = o_g * jnp.tanh(c)
        return (h, c), h

    h0 = jnp.zeros((B, H), jnp.float32)
    _, hs = jax.lax.scan(step, (h0, h0), jnp.transpose(emb, (1, 0, 2)))
    out = jnp.transpose(hs, (1, 0, 2))                                 # (B, T, H)
    mask = (jnp.arange(T)[None, :] < lengths[:, None])[:, :, None]
    out = jnp.where(mask, out, 0.0)[:, :t_out, :]
    h1 = jnp.maximum(out @ params["w1"].T + params["b1"], 0.0)
    return h1 @ params["w2"].T + params["b2"]


if __name__ == "__main__":
    vocab_size, embedding_dim, hidden_dim, output_dim = 50, 16, 32, 4
    B, T = 2, 8

    key = jax.random.PRNGKey(0)
    k_param, k_tok = jax.random.split(key)
    params = init_params(k_param, vocab_size, embedding_dim, hidden_dim, output_dim)

    token_ids = jax.random.randint(k_tok, (B, T), 0, vocab_size, dtype=jnp.int32)
    lengths = jnp.array([8, 5], dtype=jnp.int32)
    t_out = int(jnp.max(lengths))                                      # pad_packed_sequence length

    y = jax.block_until_ready(lstm_model_forward(params, token_ids, lengths, t_out))
    y_ref = jax.block_until_ready(reference_forward(params, token_ids, lengths, t_out))

    assert y.shape == (B, t_out, output_dim)
    # bf16 MXU operands (f32 accumulation) vs. an all-f32 reference -> loosened tolerance.
    assert jnp.allclose(y, y_ref, atol=3e-2, rtol=3e-2), float(jnp.max(jnp.abs(y - y_ref)))

    print("KERNEL_OK")
</pallas_src>

<mosaic_0001>
module attributes {stable_mosaic.version = 11 : i64} {
  func.func @lstm_fused_kernel(%arg0: i32, %arg1: memref<2xi32, #tpu.memory_space<smem>>, %arg2: memref<16x16xbf16, #tpu.memory_space<vmem>>, %arg3: memref<16x128xbf16, #tpu.memory_space<vmem>>, %arg4: memref<32x128xbf16, #tpu.memory_space<vmem>>, %arg5: memref<1x128xf32, #tpu.memory_space<vmem>>, %arg6: memref<32x32xbf16, #tpu.memory_space<vmem>>, %arg7: memref<1x32xf32, #tpu.memory_space<vmem>>, %arg8: memref<32x4xbf16, #tpu.memory_space<vmem>>, %arg9: memref<1x4xf32, #tpu.memory_space<vmem>>, %arg10: memref<2x8x4xf32, #tpu.memory_space<vmem>>, %arg11: memref<16x128xf32, #tpu.memory_space<vmem>>, %arg12: memref<8x2x32xf32, #tpu.memory_space<vmem>>) attributes {dimension_semantics = [#tpu.dimension_semantics<arbitrary>], iteration_bounds = array<i64: 1>, scalar_prefetch = 1 : i64, scratch_operands = 2 : i64, tpu.core_type = #tpu.core_type<tc>, window_params = [{pipeline_mode = #tpu.pipeline_mode<synchronous>, transform_indices = @transform_0, window_bounds = array<i64: 16, 16>}, {pipeline_mode = #tpu.pipeline_mode<synchronous>, transform_indices = @transform_1, window_bounds = array<i64: 16, 128>}, {pipeline_mode = #tpu.pipeline_mode<synchronous>, transform_indices = @transform_2, window_bounds = array<i64: 32, 128>}, {pipeline_mode = #tpu.pipeline_mode<synchronous>, transform_indices = @transform_3, window_bounds = array<i64: 1, 128>}, {pipeline_mode = #tpu.pipeline_mode<synchronous>, transform_indices = @transform_4, window_bounds = array<i64: 32, 32>}, {pipeline_mode = #tpu.pipeline_mode<synchronous>, transform_indices = @transform_5, window_bounds = array<i64: 1, 32>}, {pipeline_mode = #tpu.pipeline_mode<synchronous>, transform_indices = @transform_6, window_bounds = array<i64: 32, 4>}, {pipeline_mode = #tpu.pipeline_mode<synchronous>, transform_indices = @transform_7, window_bounds = array<i64: 1, 4>}, {pipeline_mode = #tpu.pipeline_mode<synchronous>, transform_indices = @transform_8, window_bounds = array<i64: 2, 8, 4>}]} {
    %c0 = arith.constant 0 : index
    %c0_0 = arith.constant 0 : index
    %0 = vector.load %arg2[%c0, %c0_0] : memref<16x16xbf16, #tpu.memory_space<vmem>>, vector<16x16xbf16>
    %c0_1 = arith.constant 0 : index
    %c0_2 = arith.constant 0 : index
    %1 = vector.load %arg3[%c0_1, %c0_2] : memref<16x128xbf16, #tpu.memory_space<vmem>>, vector<16x128xbf16>
    %cst = arith.constant dense<0.000000e+00> : vector<16x128xf32>
    %2 = tpu.matmul %0, %1, %cst {dimension_numbers = #tpu.dot_dimension_numbers<[1], [0], [0], [1], [0, 0, 1, 1], [], []>} : vector<16x16xbf16>, vector<16x128xbf16>, vector<16x128xf32> -> vector<16x128xf32>
    %c0_3 = arith.constant 0 : index
    %c0_4 = arith.constant 0 : index
    %3 = vector.load %arg5[%c0_3, %c0_4] : memref<1x128xf32, #tpu.memory_space<vmem>>, vector<1x128xf32>
    %4 = vector.broadcast %3 : vector<1x128xf32> to vector<16x128xf32>
    %5 = arith.addf %2, %4 : vector<16x128xf32>
    %c0_5 = arith.constant 0 : index
    %c0_6 = arith.constant 0 : index
    %6 = vector.load %arg11[%c0_5, %c0_6] : memref<16x128xf32, #tpu.memory_space<vmem>>, vector<16x128xf32>
    tpu.vector_store %arg11[%c0_5, %c0_6], %5 {strides = array<i32>} : memref<16x128xf32, #tpu.memory_space<vmem>>, vector<16x128xf32>,
    %c0_7 = arith.constant 0 : index
    %c0_8 = arith.constant 0 : index
    %7 = vector.load %arg4[%c0_7, %c0_8] : memref<32x128xbf16, #tpu.memory_space<vmem>>, vector<32x128xbf16>
    %cst_9 = arith.constant 0.000000e+00 : f32
    %8 = vector.broadcast %cst_9 : f32 to vector<2x32xf32>
    %c0_i32 = arith.constant 0 : i32
    %c2_i32 = arith.constant 2 : i32
    %9 = arith.muli %c0_i32, %c2_i32 : i32
    %10 = arith.index_cast %9 : i32 to index
    %c0_10 = arith.constant 0 : index
    %11 = vector.load %arg11[%10, %c0_10] : memref<16x128xf32, #tpu.memory_space<vmem>>, vector<2x128xf32>
    %12 = arith.truncf %8 : vector<2x32xf32> to vector<2x32xbf16>
    %cst_11 = arith.constant dense<0.000000e+00> : vector<2x128xf32>
    %13 = tpu.matmul %12, %7, %cst_11 {dimension_numbers = #tpu.dot_dimension_numbers<[1], [0], [0], [1], [0, 0, 1, 1], [], []>} : vector<2x32xbf16>, vector<32x128xbf16>, vector<2x128xf32> -> vector<2x128xf32>
    %14 = arith.addf %11, %13 : vector<2x128xf32>
    %15 = vector.extract_strided_slice %14 {offsets = [0, 0], sizes = [2, 32], strides = [1, 1]} : vector<2x128xf32> to vector<2x32xf32>
    %16 = arith.negf %15 : vector<2x32xf32>
    %17 = math.exp %16 : vector<2x32xf32>
    %cst_12 = arith.constant 1.000000e+00 : f32
    %18 = vector.broadcast %cst_12 : f32 to vector<2x32xf32>
    %19 = arith.addf %18, %17 : vector<2x32xf32>
    %20 = arith.divf %18, %19 : vector<2x32xf32>
    %21 = vector.extract_strided_slice %14 {offsets = [0, 32], sizes = [2, 32], strides = [1, 1]} : vector<2x128xf32> to vector<2x32xf32>
    %22 = arith.negf %21 : vector<2x32xf32>
    %23 = math.exp %22 : vector<2x32xf32>
    %cst_13 = arith.constant 1.000000e+00 : f32
    %24 = vector.broadcast %cst_13 : f32 to vector<2x32xf32>
    %25 = arith.addf %24, %23 : vector<2x32xf32>
    %26 = arith.divf %24, %25 : vector<2x32xf32>
    %27 = vector.extract_strided_slice %14 {offsets = [0, 64], sizes = [2, 32], strides = [1, 1]} : vector<2x128xf32> to vector<2x32xf32>
    %28 = math.tanh %27 : vector<2x32xf32>
    %29 = vector.extract_strided_slice %14 {offsets = [0, 96], sizes = [2, 32], strides = [1, 1]} : vector<2x128xf32> to vector<2x32xf32>
    %30 = arith.negf %29 : vector<2x32xf32>
    %31 = math.exp %30 : vector<2x32xf32>
    %cst_14 = arith.constant 1.000000e+00 : f32
    %32 = vector.broadcast %cst_14 : f32 to vector<2x32xf32>
    %33 = arith.addf %32, %31 : vector<2x32xf32>
    %34 = arith.divf %32, %33 : vector<2x32xf32>
    %35 = arith.mulf %26, %8 : vector<2x32xf32>
    %36 = arith.mulf %20, %28 : vector<2x32xf32>
    %37 = arith.addf %35, %36 : vector<2x32xf32>
    %38 = math.tanh %37 : vector<2x32xf32>
    %39 = arith.mulf %34, %38 : vector<2x32xf32>
    %40 = arith.index_cast %c0_i32 : i32 to index
    %c0_15 = arith.constant 0 : index
    %c0_16 = arith.constant 0 : index
    %41 = vector.load %arg12[%40, %c0_15, %c0_16] : memref<8x2x32xf32, #tpu.memory_space<vmem>>, vector<1x2x32xf32>
    %42 = vector.shape_cast %41 : vector<1x2x32xf32> to vector<2x32xf32>
    %43 = vector.shape_cast %39 : vector<2x32xf32> to vector<1x2x32xf32>
    tpu.vector_store %arg12[%40, %c0_15, %c0_16], %43 {strides = array<i32>} : memref<8x2x32xf32, #tpu.memory_space<vmem>>, vector<1x2x32xf32>,
    %c1_i32 = arith.constant 1 : i32
    %c2_i32_17 = arith.constant 2 : i32
    %44 = arith.muli %c1_i32, %c2_i32_17 : i32
    %45 = arith.index_cast %44 : i32 to index
    %c0_18 = arith.constant 0 : index
    %46 = vector.load %arg11[%45, %c0_18] : memref<16x128xf32, #tpu.memory_space<vmem>>, vector<2x128xf32>
    %47 = arith.truncf %39 : vector<2x32xf32> to vector<2x32xbf16>
    %cst_19 = arith.constant dense<0.000000e+00> : vector<2x128xf32>
    %48 = tpu.matmul %47, %7, %cst_19 {dimension_numbers = #tpu.dot_dimension_numbers<[1], [0], [0], [1], [0, 0, 1, 1], [], []>} : vector<2x32xbf16>, vector<32x128xbf16>, vector<2x128xf32> -> vector<2x128xf32>
    %49 = arith.addf %46, %48 : vector<2x128xf32>
    %50 = vector.extract_strided_slice %49 {offsets = [0, 0], sizes = [2, 32], strides = [1, 1]} : vector<2x128xf32> to vector<2x32xf32>
    %51 = arith.negf %50 : vector<2x32xf32>
    %52 = math.exp %51 : vector<2x32xf32>
    %cst_20 = arith.constant 1.000000e+00 : f32
    %53 = vector.broadcast %cst_20 : f32 to vector<2x32xf32>
    %54 = arith.addf %53, %52 : vector<2x32xf32>
    %55 = arith.divf %53, %54 : vector<2x32xf32>
    %56 = vector.extract_strided_slice %49 {offsets = [0, 32], sizes = [2, 32], strides = [1, 1]} : vector<2x128xf32> to vector<2x32xf32>
    %57 = arith.negf %56 : vector<2x32xf32>
    %58 = math.exp %57 : vector<2x32xf32>
    %cst_21 = arith.constant 1.000000e+00 : f32
    %59 = vector.broadcast %cst_21 : f32 to vector<2x32xf32>
    %60 = arith.addf %59, %58 : vector<2x32xf32>
    %61 = arith.divf %59, %60 : vector<2x32xf32>
    %62 = vector.extract_strided_slice %49 {offsets = [0, 64], sizes = [2, 32], strides = [1, 1]} : vector<2x128xf32> to vector<2x32xf32>
    %63 = math.tanh %62 : vector<2x32xf32>
    %64 = vector.extract_strided_slice %49 {offsets = [0, 96], sizes = [2, 32], strides = [1, 1]} : vector<2x128xf32> to vector<2x32xf32>
    %65 = arith.negf %64 : vector<2x32xf32>
    %66 = math.exp %65 : vector<2x32xf32>
    %cst_22 = arith.constant 1.000000e+00 : f32
    %67 = vector.broadcast %cst_22 : f32 to vector<2x32xf32>
    %68 = arith.addf %67, %66 : vector<2x32xf32>
    %69 = arith.divf %67, %68 : vector<2x32xf32>
    %70 = arith.mulf %61, %37 : vector<2x32xf32>
    %71 = arith.mulf %55, %63 : vector<2x32xf32>
    %72 = arith.addf %70, %71 : vector<2x32xf32>
    %73 = math.tanh %72 : vector<2x32xf32>
    %74 = arith.mulf %69, %73 : vector<2x32xf32>
    %75 = arith.index_cast %c1_i32 : i32 to index
    %c0_23 = arith.constant 0 : index
    %c0_24 = arith.constant 0 : index
    %76 = vector.load %arg12[%75, %c0_23, %c0_24] : memref<8x2x32xf32, #tpu.memory_space<vmem>>, vector<1x2x32xf32>
    %77 = vector.shape_cast %76 : vector<1x2x32xf32> to vector<2x32xf32>
    %78 = vector.shape_cast %74 : vector<2x32xf32> to vector<1x2x32xf32>
    tpu.vector_store %arg12[%75, %c0_23, %c0_24], %78 {strides = array<i32>} : memref<8x2x32xf32, #tpu.memory_space<vmem>>, vector<1x2x32xf32>,
    %c2_i32_25 = arith.constant 2 : i32
    %c2_i32_26 = arith.constant 2 : i32
    %79 = arith.muli %c2_i32_25, %c2_i32_26 : i32
    %80 = arith.index_cast %79 : i32 to index
    %c0_27 = arith.constant 0 : index
    %81 = vector.load %arg11[%80, %c0_27] : memref<16x128xf32, #tpu.memory_space<vmem>>, vector<2x128xf32>
    %82 = arith.truncf %74 : vector<2x32xf32> to vector<2x32xbf16>
    %cst_28 = arith.constant dense<0.000000e+00> : vector<2x128xf32>
    %83 = tpu.matmul %82, %7, %cst_28 {dimension_numbers = #tpu.dot_dimension_numbers<[1], [0], [0], [1], [0, 0, 1, 1], [], []>} : vector<2x32xbf16>, vector<32x128xbf16>, vector<2x128xf32> -> vector<2x128xf32>
    %84 = arith.addf %81, %83 : vector<2x128xf32>
    %85 = vector.extract_strided_slice %84 {offsets = [0, 0], sizes = [2, 32], strides = [1, 1]} : vector<2x128xf32> to vector<2x32xf32>
    %86 = arith.negf %85 : vector<2x32xf32>
    %87 = math.exp %86 : vector<2x32xf32>
    %cst_29 = arith.constant 1.000000e+00 : f32
    %88 = vector.broadcast %cst_29 : f32 to vector<2x32xf32>
    %89 = arith.addf %88, %87 : vector<2x32xf32>
    %90 = arith.divf %88, %89 : vector<2x32xf32>
    %91 = vector.extract_strided_slice %84 {offsets = [0, 32], sizes = [2, 32], strides = [1, 1]} : vector<2x128xf32> to vector<2x32xf32>
    %92 = arith.negf %91 : vector<2x32xf32>
    %93 = math.exp %92 : vector<2x32xf32>
    %cst_30 = arith.constant 1.000000e+00 : f32
    %94 = vector.broadcast %cst_30 : f32 to vector<2x32xf32>
    %95 = arith.addf %94, %93 : vector<2x32xf32>
    %96 = arith.divf %94, %95 : vector<2x32xf32>
    %97 = vector.extract_strided_slice %84 {offsets = [0, 64], sizes = [2, 32], strides = [1, 1]} : vector<2x128xf32> to vector<2x32xf32>
    %98 = math.tanh %97 : vector<2x32xf32>
    %99 = vector.extract_strided_slice %84 {offsets = [0, 96], sizes = [2, 32], strides = [1, 1]} : vector<2x128xf32> to vector<2x32xf32>
    %100 = arith.negf %99 : vector<2x32xf32>
    %101 = math.exp %100 : vector<2x32xf32>
    %cst_31 = arith.constant 1.000000e+00 : f32
    %102 = vector.broadcast %cst_31 : f32 to vector<2x32xf32>
    %103 = arith.addf %102, %101 : vector<2x32xf32>
    %104 = arith.divf %102, %103 : vector<2x32xf32>
    %105 = arith.mulf %96, %72 : vector<2x32xf32>
    %106 = arith.mulf %90, %98 : vector<2x32xf32>
    %107 = arith.addf %105, %106 : vector<2x32xf32>
    %108 = math.tanh %107 : vector<2x32xf32>
    %109 = arith.mulf %104, %108 : vector<2x32xf32>
    %110 = arith.index_cast %c2_i32_25 : i32 to index
    %c0_32 = arith.constant 0 : index
    %c0_33 = arith.constant 0 : index
    %111 = vector.load %arg12[%110, %c0_32, %c0_33] : memref<8x2x32xf32, #tpu.memory_space<vmem>>, vector<1x2x32xf32>
    %112 = vector.shape_cast %111 : vector<1x2x32xf32> to vector<2x32xf32>
    %113 = vector.shape_cast %109 : vector<2x32xf32> to vector<1x2x32xf32>
    tpu.vector_store %arg12[%110, %c0_32, %c0_33], %113 {strides = array<i32>} : memref<8x2x32xf32, #tpu.memory_space<vmem>>, vector<1x2x32xf32>,
    %c3_i32 = arith.constant 3 : i32
    %c2_i32_34 = arith.constant 2 : i32
    %114 = arith.muli %c3_i32, %c2_i32_34 : i32
    %115 = arith.index_cast %114 : i32 to index
    %c0_35 = arith.constant 0 : index
    %116 = vector.load %arg11[%115, %c0_35] : memref<16x128xf32, #tpu.memory_space<vmem>>, vector<2x128xf32>
    %117 = arith.truncf %109 : vector<2x32xf32> to vector<2x32xbf16>
    %cst_36 = arith.constant dense<0.000000e+00> : vector<2x128xf32>
    %118 = tpu.matmul %117, %7, %cst_36 {dimension_numbers = #tpu.dot_dimension_numbers<[1], [0], [0], [1], [0, 0, 1, 1], [], []>} : vector<2x32xbf16>, vector<32x128xbf16>, vector<2x128xf32> -> vector<2x128xf32>
    %119 = arith.addf %116, %118 : vector<2x128xf32>
    %120 = vector.extract_strided_slice %119 {offsets = [0, 0], sizes = [2, 32], strides = [1, 1]} : vector<2x128xf32> to vector<2x32xf32>
    %121 = arith.negf %120 : vector<2x32xf32>
    %122 = math.exp %121 : vector<2x32xf32>
    %cst_37 = arith.constant 1.000000e+00 : f32
    %123 = vector.broadcast %cst_37 : f32 to vector<2x32xf32>
    %124 = arith.addf %123, %122 : vector<2x32xf32>
    %125 = arith.divf %123, %124 : vector<2x32xf32>
    %126 = vector.extract_strided_slice %119 {offsets = [0, 32], sizes = [2, 32], strides = [1, 1]} : vector<2x128xf32> to vector<2x32xf32>
    %127 = arith.negf %126 : vector<2x32xf32>
    %128 = math.exp %127 : vector<2x32xf32>
    %cst_38 = arith.constant 1.000000e+00 : f32
    %129 = vector.broadcast %cst_38 : f32 to vector<2x32xf32>
    %130 = arith.addf %129, %128 : vector<2x32xf32>
    %131 = arith.divf %129, %130 : vector<2x32xf32>
    %132 = vector.extract_strided_slice %119 {offsets = [0, 64], sizes = [2, 32], strides = [1, 1]} : vector<2x128xf32> to vector<2x32xf32>
    %133 = math.tanh %132 : vector<2x32xf32>
    %134 = vector.extract_strided_slice %119 {offsets = [0, 96], sizes = [2, 32], strides = [1, 1]} : vector<2x128xf32> to vector<2x32xf32>
    %135 = arith.negf %134 : vector<2x32xf32>
    %136 = math.exp %135 : vector<2x32xf32>
    %cst_39 = arith.constant 1.000000e+00 : f32
    %137 = vector.broadcast %cst_39 : f32 to vector<2x32xf32>
    %138 = arith.addf %137, %136 : vector<2x32xf32>
    %139 = arith.divf %137, %138 : vector<2x32xf32>
    %140 = arith.mulf %131, %107 : vector<2x32xf32>
    %141 = arith.mulf %125, %133 : vector<2x32xf32>
    %142 = arith.addf %140, %141 : vector<2x32xf32>
    %143 = math.tanh %142 : vector<2x32xf32>
    %144 = arith.mulf %139, %143 : vector<2x32xf32>
    %145 = arith.index_cast %c3_i32 : i32 to index
    %c0_40 = arith.constant 0 : index
    %c0_41 = arith.constant 0 : index
    %146 = vector.load %arg12[%145, %c0_40, %c0_41] : memref<8x2x32xf32, #tpu.memory_space<vmem>>, vector<1x2x32xf32>
    %147 = vector.shape_cast %146 : vector<1x2x32xf32> to vector<2x32xf32>
    %148 = vector.shape_cast %144 : vector<2x32xf32> to vector<1x2x32xf32>
    tpu.vector_store %arg12[%145, %c0_40, %c0_41], %148 {strides = array<i32>} : memref<8x2x32xf32, #tpu.memory_space<vmem>>, vector<1x2x32xf32>,
    %c4_i32 = arith.constant 4 : i32
    %c2_i32_42 = arith.constant 2 : i32
    %149 = arith.muli %c4_i32, %c2_i32_42 : i32
    %150 = arith.index_cast %149 : i32 to index
    %c0_43 = arith.constant 0 : index
    %151 = vector.load %arg11[%150, %c0_43] : memref<16x128xf32, #tpu.memory_space<vmem>>, vector<2x128xf32>
    %152 = arith.truncf %144 : vector<2x32xf32> to vector<2x32xbf16>
    %cst_44 = arith.constant dense<0.000000e+00> : vector<2x128xf32>
    %153 = tpu.matmul %152, %7, %cst_44 {dimension_numbers = #tpu.dot_dimension_numbers<[1], [0], [0], [1], [0, 0, 1, 1], [], []>} : vector<2x32xbf16>, vector<32x128xbf16>, vector<2x128xf32> -> vector<2x128xf32>
    %154 = arith.addf %151, %153 : vector<2x128xf32>
    %155 = vector.extract_strided_slice %154 {offsets = [0, 0], sizes = [2, 32], strides = [1, 1]} : vector<2x128xf32> to vector<2x32xf32>
    %156 = arith.negf %155 : vector<2x32xf32>
    %157 = math.exp %156 : vector<2x32xf32>
    %cst_45 = arith.constant 1.000000e+00 : f32
    %158 = vector.broadcast %cst_45 : f32 to vector<2x32xf32>
    %159 = arith.addf %158, %157 : vector<2x32xf32>
    %160 = arith.divf %158, %159 : vector<2x32xf32>
    %161 = vector.extract_strided_slice %154 {offsets = [0, 32], sizes = [2, 32], strides = [1, 1]} : vector<2x128xf32> to vector<2x32xf32>
    %162 = arith.negf %161 : vector<2x32xf32>
    %163 = math.exp %162 : vector<2x32xf32>
    %cst_46 = arith.constant 1.000000e+00 : f32
    %164 = vector.broadcast %cst_46 : f32 to vector<2x32xf32>
    %165 = arith.addf %164, %163 : vector<2x32xf32>
    %166 = arith.divf %164, %165 : vector<2x32xf32>
    %167 = vector.extract_strided_slice %154 {offsets = [0, 64], sizes = [2, 32], strides = [1, 1]} : vector<2x128xf32> to vector<2x32xf32>
    %168 = math.tanh %167 : vector<2x32xf32>
    %169 = vector.extract_strided_slice %154 {offsets = [0, 96], sizes = [2, 32], strides = [1, 1]} : vector<2x128xf32> to vector<2x32xf32>
    %170 = arith.negf %169 : vector<2x32xf32>
    %171 = math.exp %170 : vector<2x32xf32>
    %cst_47 = arith.constant 1.000000e+00 : f32
    %172 = vector.broadcast %cst_47 : f32 to vector<2x32xf32>
    %173 = arith.addf %172, %171 : vector<2x32xf32>
    %174 = arith.divf %172, %173 : vector<2x32xf32>
    %175 = arith.mulf %166, %142 : vector<2x32xf32>
    %176 = arith.mulf %160, %168 : vector<2x32xf32>
    %177 = arith.addf %175, %176 : vector<2x32xf32>
    %178 = math.tanh %177 : vector<2x32xf32>
    %179 = arith.mulf %174, %178 : vector<2x32xf32>
    %180 = arith.index_cast %c4_i32 : i32 to index
    %c0_48 = arith.constant 0 : index
    %c0_49 = arith.constant 0 : index
    %181 = vector.load %arg12[%180, %c0_48, %c0_49] : memref<8x2x32xf32, #tpu.memory_space<vmem>>, vector<1x2x32xf32>
    %182 = vector.shape_cast %181 : vector<1x2x32xf32> to vector<2x32xf32>
    %183 = vector.shape_cast %179 : vector<2x32xf32> to vector<1x2x32xf32>
    tpu.vector_store %arg12[%180, %c0_48, %c0_49], %183 {strides = array<i32>} : memref<8x2x32xf32, #tpu.memory_space<vmem>>, vector<1x2x32xf32>,
    %c5_i32 = arith.constant 5 : i32
    %c2_i32_50 = arith.constant 2 : i32
    %184 = arith.muli %c5_i32, %c2_i32_50 : i32
    %185 = arith.index_cast %184 : i32 to index
    %c0_51 = arith.constant 0 : index
    %186 = vector.load %arg11[%185, %c0_51] : memref<16x128xf32, #tpu.memory_space<vmem>>, vector<2x128xf32>
    %187 = arith.truncf %179 : vector<2x32xf32> to vector<2x32xbf16>
    %cst_52 = arith.constant dense<0.000000e+00> : vector<2x128xf32>
    %188 = tpu.matmul %187, %7, %cst_52 {dimension_numbers = #tpu.dot_dimension_numbers<[1], [0], [0], [1], [0, 0, 1, 1], [], []>} : vector<2x32xbf16>, vector<32x128xbf16>, vector<2x128xf32> -> vector<2x128xf32>
    %189 = arith.addf %186, %188 : vector<2x128xf32>
    %190 = vector.extract_strided_slice %189 {offsets = [0, 0], sizes = [2, 32], strides = [1, 1]} : vector<2x128xf32> to vector<2x32xf32>
    %191 = arith.negf %190 : vector<2x32xf32>
    %192 = math.exp %191 : vector<2x32xf32>
    %cst_53 = arith.constant 1.000000e+00 : f32
    %193 = vector.broadcast %cst_53 : f32 to vector<2x32xf32>
    %194 = arith.addf %193, %192 : vector<2x32xf32>
    %195 = arith.divf %193, %194 : vector<2x32xf32>
    %196 = vector.extract_strided_slice %189 {offsets = [0, 32], sizes = [2, 32], strides = [1, 1]} : vector<2x128xf32> to vector<2x32xf32>
    %197 = arith.negf %196 : vector<2x32xf32>
    %198 = math.exp %197 : vector<2x32xf32>
    %cst_54 = arith.constant 1.000000e+00 : f32
    %199 = vector.broadcast %cst_54 : f32 to vector<2x32xf32>
    %200 = arith.addf %199, %198 : vector<2x32xf32>
    %201 = arith.divf %199, %200 : vector<2x32xf32>
    %202 = vector.extract_strided_slice %189 {offsets = [0, 64], sizes = [2, 32], strides = [1, 1]} : vector<2x128xf32> to vector<2x32xf32>
    %203 = math.tanh %202 : vector<2x32xf32>
    %204 = vector.extract_strided_slice %189 {offsets = [0, 96], sizes = [2, 32], strides = [1, 1]} : vector<2x128xf32> to vector<2x32xf32>
    %205 = arith.negf %204 : vector<2x32xf32>
    %206 = math.exp %205 : vector<2x32xf32>
    %cst_55 = arith.constant 1.000000e+00 : f32
    %207 = vector.broadcast %cst_55 : f32 to vector<2x32xf32>
    %208 = arith.addf %207, %206 : vector<2x32xf32>
    %209 = arith.divf %207, %208 : vector<2x32xf32>
    %210 = arith.mulf %201, %177 : vector<2x32xf32>
    %211 = arith.mulf %195, %203 : vector<2x32xf32>
    %212 = arith.addf %210, %211 : vector<2x32xf32>
    %213 = math.tanh %212 : vector<2x32xf32>
    %214 = arith.mulf %209, %213 : vector<2x32xf32>
    %215 = arith.index_cast %c5_i32 : i32 to index
    %c0_56 = arith.constant 0 : index
    %c0_57 = arith.constant 0 : index
    %216 = vector.load %arg12[%215, %c0_56, %c0_57] : memref<8x2x32xf32, #tpu.memory_space<vmem>>, vector<1x2x32xf32>
    %217 = vector.shape_cast %216 : vector<1x2x32xf32> to vector<2x32xf32>
    %218 = vector.shape_cast %214 : vector<2x32xf32> to vector<1x2x32xf32>
    tpu.vector_store %arg12[%215, %c0_56, %c0_57], %218 {strides = array<i32>} : memref<8x2x32xf32, #tpu.memory_space<vmem>>, vector<1x2x32xf32>,
    %c6_i32 = arith.constant 6 : i32
    %c2_i32_58 = arith.constant 2 : i32
    %219 = arith.muli %c6_i32, %c2_i32_58 : i32
    %220 = arith.index_cast %219 : i32 to index
    %c0_59 = arith.constant 0 : index
    %221 = vector.load %arg11[%220, %c0_59] : memref<16x128xf32, #tpu.memory_space<vmem>>, vector<2x128xf32>
    %222 = arith.truncf %214 : vector<2x32xf32> to vector<2x32xbf16>
    %cst_60 = arith.constant dense<0.000000e+00> : vector<2x128xf32>
    %223 = tpu.matmul %222, %7, %cst_60 {dimension_numbers = #tpu.dot_dimension_numbers<[1], [0], [0], [1], [0, 0, 1, 1], [], []>} : vector<2x32xbf16>, vector<32x128xbf16>, vector<2x128xf32> -> vector<2x128xf32>
    %224 = arith.addf %221, %223 : vector<2x128xf32>
    %225 = vector.extract_strided_slice %224 {offsets = [0, 0], sizes = [2, 32], strides = [1, 1]} : vector<2x128xf32> to vector<2x32xf32>
    %226 = arith.negf %225 : vector<2x32xf32>
    %227 = math.exp %226 : vector<2x32xf32>
    %cst_61 = arith.constant 1.000000e+00 : f32
    %228 = vector.broadcast %cst_61 : f32 to vector<2x32xf32>
    %229 = arith.addf %228, %227 : vector<2x32xf32>
    %230 = arith.divf %228, %229 : vector<2x32xf32>
    %231 = vector.extract_strided_slice %224 {offsets = [0, 32], sizes = [2, 32], strides = [1, 1]} : vector<2x128xf32> to vector<2x32xf32>
    %232 = arith.negf %231 : vector<2x32xf32>
    %233 = math.exp %232 : vector<2x32xf32>
    %cst_62 = arith.constant 1.000000e+00 : f32
    %234 = vector.broadcast %cst_62 : f32 to vector<2x32xf32>
    %235 = arith.addf %234, %233 : vector<2x32xf32>
    %236 = arith.divf %234, %235 : vector<2x32xf32>
    %237 = vector.extract_strided_slice %224 {offsets = [0, 64], sizes = [2, 32], strides = [1, 1]} : vector<2x128xf32> to vector<2x32xf32>
    %238 = math.tanh %237 : vector<2x32xf32>
    %239 = vector.extract_strided_slice %224 {offsets = [0, 96], sizes = [2, 32], strides = [1, 1]} : vector<2x128xf32> to vector<2x32xf32>
    %240 = arith.negf %239 : vector<2x32xf32>
    %241 = math.exp %240 : vector<2x32xf32>
    %cst_63 = arith.constant 1.000000e+00 : f32
    %242 = vector.broadcast %cst_63 : f32 to vector<2x32xf32>
    %243 = arith.addf %242, %241 : vector<2x32xf32>
    %244 = arith.divf %242, %243 : vector<2x32xf32>
    %245 = arith.mulf %236, %212 : vector<2x32xf32>
    %246 = arith.mulf %230, %238 : vector<2x32xf32>
    %247 = arith.addf %245, %246 : vector<2x32xf32>
    %248 = math.tanh %247 : vector<2x32xf32>
    %249 = arith.mulf %244, %248 : vector<2x32xf32>
    %250 = arith.index_cast %c6_i32 : i32 to index
    %c0_64 = arith.constant 0 : index
    %c0_65 = arith.constant 0 : index
    %251 = vector.load %arg12[%250, %c0_64, %c0_65] : memref<8x2x32xf32, #tpu.memory_space<vmem>>, vector<1x2x32xf32>
    %252 = vector.shape_cast %251 : vector<1x2x32xf32> to vector<2x32xf32>
    %253 = vector.shape_cast %249 : vector<2x32xf32> to vector<1x2x32xf32>
    tpu.vector_store %arg12[%250, %c0_64, %c0_65], %253 {strides = array<i32>} : memref<8x2x32xf32, #tpu.memory_space<vmem>>, vector<1x2x32xf32>,
    %c7_i32 = arith.constant 7 : i32
    %c2_i32_66 = arith.constant 2 : i32
    %254 = arith.muli %c7_i32, %c2_i32_66 : i32
    %255 = arith.index_cast %254 : i32 to index
    %c0_67 = arith.constant 0 : index
    %256 = vector.load %arg11[%255, %c0_67] : memref<16x128xf32, #tpu.memory_space<vmem>>, vector<2x128xf32>
    %257 = arith.truncf %249 : vector<2x32xf32> to vector<2x32xbf16>
    %cst_68 = arith.constant dense<0.000000e+00> : vector<2x128xf32>
    %258 = tpu.matmul %257, %7, %cst_68 {dimension_numbers = #tpu.dot_dimension_numbers<[1], [0], [0], [1], [0, 0, 1, 1], [], []>} : vector<2x32xbf16>, vector<32x128xbf16>, vector<2x128xf32> -> vector<2x128xf32>
    %259 = arith.addf %256, %258 : vector<2x128xf32>
    %260 = vector.extract_strided_slice %259 {offsets = [0, 0], sizes = [2, 32], strides = [1, 1]} : vector<2x128xf32> to vector<2x32xf32>
    %261 = arith.negf %260 : vector<2x32xf32>
    %262 = math.exp %261 : vector<2x32xf32>
    %cst_69 = arith.constant 1.000000e+00 : f32
    %263 = vector.broadcast %cst_69 : f32 to vector<2x32xf32>
    %264 = arith.addf %263, %262 : vector<2x32xf32>
    %265 = arith.divf %263, %264 : vector<2x32xf32>
    %266 = vector.extract_strided_slice %259 {offsets = [0, 32], sizes = [2, 32], strides = [1, 1]} : vector<2x128xf32> to vector<2x32xf32>
    %267 = arith.negf %266 : vector<2x32xf32>
    %268 = math.exp %267 : vector<2x32xf32>
    %cst_70 = arith.constant 1.000000e+00 : f32
    %269 = vector.broadcast %cst_70 : f32 to vector<2x32xf32>
    %270 = arith.addf %269, %268 : vector<2x32xf32>
    %271 = arith.divf %269, %270 : vector<2x32xf32>
    %272 = vector.extract_strided_slice %259 {offsets = [0, 64], sizes = [2, 32], strides = [1, 1]} : vector<2x128xf32> to vector<2x32xf32>
    %273 = math.tanh %272 : vector<2x32xf32>
    %274 = vector.extract_strided_slice %259 {offsets = [0, 96], sizes = [2, 32], strides = [1, 1]} : vector<2x128xf32> to vector<2x32xf32>
    %275 = arith.negf %274 : vector<2x32xf32>
    %276 = math.exp %275 : vector<2x32xf32>
    %cst_71 = arith.constant 1.000000e+00 : f32
    %277 = vector.broadcast %cst_71 : f32 to vector<2x32xf32>
    %278 = arith.addf %277, %276 : vector<2x32xf32>
    %279 = arith.divf %277, %278 : vector<2x32xf32>
    %280 = arith.mulf %271, %247 : vector<2x32xf32>
    %281 = arith.mulf %265, %273 : vector<2x32xf32>
    %282 = arith.addf %280, %281 : vector<2x32xf32>
    %283 = math.tanh %282 : vector<2x32xf32>
    %284 = arith.mulf %279, %283 : vector<2x32xf32>
    %285 = arith.index_cast %c7_i32 : i32 to index
    %c0_72 = arith.constant 0 : index
    %c0_73 = arith.constant 0 : index
    %286 = vector.load %arg12[%285, %c0_72, %c0_73] : memref<8x2x32xf32, #tpu.memory_space<vmem>>, vector<1x2x32xf32>
    %287 = vector.shape_cast %286 : vector<1x2x32xf32> to vector<2x32xf32>
    %288 = vector.shape_cast %284 : vector<2x32xf32> to vector<1x2x32xf32>
    tpu.vector_store %arg12[%285, %c0_72, %c0_73], %288 {strides = array<i32>} : memref<8x2x32xf32, #tpu.memory_space<vmem>>, vector<1x2x32xf32>,
    %c8_i32 = arith.constant 8 : i32
    %c0_74 = arith.constant 0 : index
    %c0_75 = arith.constant 0 : index
    %289 = vector.load %arg6[%c0_74, %c0_75] : memref<32x32xbf16, #tpu.memory_space<vmem>>, vector<32x32xbf16>
    %c0_76 = arith.constant 0 : index
    %c0_77 = arith.constant 0 : index
    %290 = vector.load %arg7[%c0_76, %c0_77] : memref<1x32xf32, #tpu.memory_space<vmem>>, vector<1x32xf32>
    %c0_78 = arith.constant 0 : index
    %c0_79 = arith.constant 0 : index
    %291 = vector.load %arg8[%c0_78, %c0_79] : memref<32x4xbf16, #tpu.memory_space<vmem>>, vector<32x4xbf16>
    %c0_80 = arith.constant 0 : index
    %c0_81 = arith.constant 0 : index
    %292 = vector.load %arg9[%c0_80, %c0_81] : memref<1x4xf32, #tpu.memory_space<vmem>>, vector<1x4xf32>
    %293 = tpu.iota {dimensions = array<i32: 0>} : vector<8x1xi32>
    %c0_82 = arith.constant 0 : index
    %294 = memref.load %arg1[%c0_82] : memref<2xi32, #tpu.memory_space<smem>>
    %295 = vector.broadcast %294 : i32 to vector<8x1xi32>
    %296 = arith.cmpi slt, %293, %295 : vector<8x1xi32>
    %c0_83 = arith.constant 0 : index
    %c0_84 = arith.constant 0 : index
    %c0_85 = arith.constant 0 : index
    %297 = vector.load %arg12[%c0_83, %c0_84, %c0_85] : memref<8x2x32xf32, #tpu.memory_space<vmem>>, vector<8x1x32xf32>
    %298 = vector.shape_cast %297 : vector<8x1x32xf32> to vector<8x32xf32>
    %cst_86 = arith.constant 0.000000e+00 : f32
    %299 = vector.shape_cast %296 : vector<8x1xi1> to vector<8x1xi1>
    %300 = vector.broadcast %299 : vector<8x1xi1> to vector<8x32xi1>
    %301 = vector.broadcast %cst_86 : f32 to vector<8x32xf32>
    %302 = arith.select %300, %298, %301 : vector<8x32xi1>, vector<8x32xf32>
    %303 = arith.truncf %302 : vector<8x32xf32> to vector<8x32xbf16>
    %cst_87 = arith.constant dense<0.000000e+00> : vector<8x32xf32>
    %304 = tpu.matmul %303, %289, %cst_87 {dimension_numbers = #tpu.dot_dimension_numbers<[1], [0], [0], [1], [0, 0, 1, 1], [], []>} : vector<8x32xbf16>, vector<32x32xbf16>, vector<8x32xf32> -> vector<8x32xf32>
    %305 = vector.broadcast %290 : vector<1x32xf32> to vector<8x32xf32>
    %306 = arith.addf %304, %305 : vector<8x32xf32>
    %cst_88 = arith.constant 0.000000e+00 : f32
    %307 = vector.broadcast %cst_88 : f32 to vector<8x32xf32>
    %308 = arith.maximumf %306, %307 : vector<8x32xf32>
    %309 = arith.truncf %308 : vector<8x32xf32> to vector<8x32xbf16>
    %cst_89 = arith.constant dense<0.000000e+00> : vector<8x4xf32>
    %310 = tpu.matmul %309, %291, %cst_89 {dimension_numbers = #tpu.dot_dimension_numbers<[1], [0], [0], [1], [0, 0, 1, 1], [], []>} : vector<8x32xbf16>, vector<32x4xbf16>, vector<8x4xf32> -> vector<8x4xf32>
    %311 = vector.broadcast %292 : vector<1x4xf32> to vector<8x4xf32>
    %312 = arith.addf %310, %311 : vector<8x4xf32>
    %c0_90 = arith.constant 0 : index
    %c0_91 = arith.constant 0 : index
    %c0_92 = arith.constant 0 : index
    %313 = vector.load %arg10[%c0_90, %c0_91, %c0_92] : memref<2x8x4xf32, #tpu.memory_space<vmem>>, vector<1x8x4xf32>
    %314 = vector.shape_cast %313 : vector<1x8x4xf32> to vector<8x4xf32>
    %315 = vector.shape_cast %312 : vector<8x4xf32> to vector<1x8x4xf32>
    tpu.vector_store %arg10[%c0_90, %c0_91, %c0_92], %315 {strides = array<i32>} : memref<2x8x4xf32, #tpu.memory_space<vmem>>, vector<1x8x4xf32>,
    %c1 = arith.constant 1 : index
    %316 = memref.load %arg1[%c1] : memref<2xi32, #tpu.memory_space<smem>>
    %317 = vector.broadcast %316 : i32 to vector<8x1xi32>
    %318 = arith.cmpi slt, %293, %317 : vector<8x1xi32>
    %c0_93 = arith.constant 0 : index
    %c1_94 = arith.constant 1 : index
    %c0_95 = arith.constant 0 : index
    %319 = vector.load %arg12[%c0_93, %c1_94, %c0_95] : memref<8x2x32xf32, #tpu.memory_space<vmem>>, vector<8x1x32xf32>
    %320 = vector.shape_cast %319 : vector<8x1x32xf32> to vector<8x32xf32>
    %cst_96 = arith.constant 0.000000e+00 : f32
    %321 = vector.shape_cast %318 : vector<8x1xi1> to vector<8x1xi1>
    %322 = vector.broadcast %321 : vector<8x1xi1> to vector<8x32xi1>
    %323 = vector.broadcast %cst_96 : f32 to vector<8x32xf32>
    %324 = arith.select %322, %320, %323 : vector<8x32xi1>, vector<8x32xf32>
    %325 = arith.truncf %324 : vector<8x32xf32> to vector<8x32xbf16>
    %cst_97 = arith.constant dense<0.000000e+00> : vector<8x32xf32>
    %326 = tpu.matmul %325, %289, %cst_97 {dimension_numbers = #tpu.dot_dimension_numbers<[1], [0], [0], [1], [0, 0, 1, 1], [], []>} : vector<8x32xbf16>, vector<32x32xbf16>, vector<8x32xf32> -> vector<8x32xf32>
    %327 = vector.broadcast %290 : vector<1x32xf32> to vector<8x32xf32>
    %328 = arith.addf %326, %327 : vector<8x32xf32>
    %cst_98 = arith.constant 0.000000e+00 : f32
    %329 = vector.broadcast %cst_98 : f32 to vector<8x32xf32>
    %330 = arith.maximumf %328, %329 : vector<8x32xf32>
    %331 = arith.truncf %330 : vector<8x32xf32> to vector<8x32xbf16>
    %cst_99 = arith.constant dense<0.000000e+00> : vector<8x4xf32>
    %332 = tpu.matmul %331, %291, %cst_99 {dimension_numbers = #tpu.dot_dimension_numbers<[1], [0], [0], [1], [0, 0, 1, 1], [], []>} : vector<8x32xbf16>, vector<32x4xbf16>, vector<8x4xf32> -> vector<8x4xf32>
    %333 = vector.broadcast %292 : vector<1x4xf32> to vector<8x4xf32>
    %334 = arith.addf %332, %333 : vector<8x4xf32>
    %c1_100 = arith.constant 1 : index
    %c0_101 = arith.constant 0 : index
    %c0_102 = arith.constant 0 : index
    %335 = vector.load %arg10[%c1_100, %c0_101, %c0_102] : memref<2x8x4xf32, #tpu.memory_space<vmem>>, vector<1x8x4xf32>
    %336 = vector.shape_cast %335 : vector<1x8x4xf32> to vector<8x4xf32>
    %337 = vector.shape_cast %334 : vector<8x4xf32> to vector<1x8x4xf32>
    tpu.vector_store %arg10[%c1_100, %c0_101, %c0_102], %337 {strides = array<i32>} : memref<2x8x4xf32, #tpu.memory_space<vmem>>, vector<1x8x4xf32>,
    return
  }
  func.func @transform_0(%arg0: i32, %arg1: memref<2xi32, #tpu.memory_space<smem>>) -> (i32, i32) {
    %c0_i32 = arith.constant 0 : i32
    %c0_i32_0 = arith.constant 0 : i32
    %c0_i32_1 = arith.constant 0 : i32
    return %c0_i32, %c0_i32_0 : i32, i32
  }
  func.func @transform_1(%arg0: i32, %arg1: memref<2xi32, #tpu.memory_space<smem>>) -> (i32, i32) {
    %c0_i32 = arith.constant 0 : i32
    %c0_i32_0 = arith.constant 0 : i32
    %c0_i32_1 = arith.constant 0 : i32
    return %c0_i32, %c0_i32_0 : i32, i32
  }
  func.func @transform_2(%arg0: i32, %arg1: memref<2xi32, #tpu.memory_space<smem>>) -> (i32, i32) {
    %c0_i32 = arith.constant 0 : i32
    %c0_i32_0 = arith.constant 0 : i32
    %c0_i32_1 = arith.constant 0 : i32
    return %c0_i32, %c0_i32_0 : i32, i32
  }
  func.func @transform_3(%arg0: i32, %arg1: memref<2xi32, #tpu.memory_space<smem>>) -> (i32, i32) {
    %c0_i32 = arith.constant 0 : i32
    %c0_i32_0 = arith.constant 0 : i32
    %c0_i32_1 = arith.constant 0 : i32
    return %c0_i32, %c0_i32_0 : i32, i32
  }
  func.func @transform_4(%arg0: i32, %arg1: memref<2xi32, #tpu.memory_space<smem>>) -> (i32, i32) {
    %c0_i32 = arith.constant 0 : i32
    %c0_i32_0 = arith.constant 0 : i32
    %c0_i32_1 = arith.constant 0 : i32
    return %c0_i32, %c0_i32_0 : i32, i32
  }
  func.func @transform_5(%arg0: i32, %arg1: memref<2xi32, #tpu.memory_space<smem>>) -> (i32, i32) {
    %c0_i32 = arith.constant 0 : i32
    %c0_i32_0 = arith.constant 0 : i32
    %c0_i32_1 = arith.constant 0 : i32
    return %c0_i32, %c0_i32_0 : i32, i32
  }
  func.func @transform_6(%arg0: i32, %arg1: memref<2xi32, #tpu.memory_space<smem>>) -> (i32, i32) {
    %c0_i32 = arith.constant 0 : i32
    %c0_i32_0 = arith.constant 0 : i32
    %c0_i32_1 = arith.constant 0 : i32
    return %c0_i32, %c0_i32_0 : i32, i32
  }
  func.func @transform_7(%arg0: i32, %arg1: memref<2xi32, #tpu.memory_space<smem>>) -> (i32, i32) {
    %c0_i32 = arith.constant 0 : i32
    %c0_i32_0 = arith.constant 0 : i32
    %c0_i32_1 = arith.constant 0 : i32
    return %c0_i32, %c0_i32_0 : i32, i32
  }
  func.func @transform_8(%arg0: i32, %arg1: memref<2xi32, #tpu.memory_space<smem>>) -> (i32, i32, i32) {
    %c0_i32 = arith.constant 0 : i32
    %c0_i32_0 = arith.constant 0 : i32
    %c0_i32_1 = arith.constant 0 : i32
    %c0_i32_2 = arith.constant 0 : i32
    return %c0_i32, %c0_i32_0, %c0_i32_1 : i32, i32, i32
  }
}

</mosaic_0001>

<llo_original>
// kernel: tpu_custom_call.1
$region0: #{tpu_custom_call.1}
  #allocation0 [shape = 'u32[]', space=smem, size = 0x4, offset = 0x4, fixed_abs, tag = 'smem constant byte address 0x4 - core index']
  #allocation1 [shape = 'u32[144,128]{1,0:T(1,128)}', space=vmem, size = 0x12000, scoped, tag = 'internal scratch']
  #allocation2 [shape = 'f32[16,128]{1,0:T(8,128)}', space=vmem, size = 0x2000, scoped, tag = 'scratch operand']
  #allocation3 [shape = 'f32[8,2,32]{2,1,0:T(2,128)}', space=vmem, size = 0x2000, scoped, tag = 'scratch operand']
  #allocation4 [shape = 's32[1]{0}', space=sflag, size = 0x4, scoped, tag = 'scoped memory for tpu_custom_call.1']
  #allocation5 [shape = 'u8[512]{0}', space=smem, size = 0x200, scoped, tag = 'prefetched SMEM operand 0']
  %s0 = inlined_call_operand.vmem [shape: s32[2], index: 0, kind: input, shape index: {}]
  %s1 = inlined_call_operand.hbm [shape: bf16[16,16], index: 1, kind: input, shape index: {}]
  %s2 = inlined_call_operand.hbm [shape: bf16[16,128], index: 2, kind: input, shape index: {}]
  %s3 = inlined_call_operand.vmem [shape: bf16[32,128], index: 3, kind: input, shape index: {}]
  %s4 = inlined_call_operand.hbm [shape: f32[1,128], index: 4, kind: input, shape index: {}]
  %s5 = inlined_call_operand.vmem [shape: bf16[32,32], index: 5, kind: input, shape index: {}]
  %s6 = inlined_call_operand.vmem [shape: f32[1,32], index: 6, kind: input, shape index: {}]
  %s7 = inlined_call_operand.vmem [shape: bf16[32,4], index: 7, kind: input, shape index: {}]
  %s8 = inlined_call_operand.vmem [shape: f32[1,4], index: 8, kind: input, shape index: {}]
  %s9 = inlined_call_operand.vmem [shape: f32[2,8,4], index: 9, kind: output, shape index: {}]
  %s10 = sld [smem:[#allocation0]]
  $region54: #{tpu_custom_call.1} parent=0
    _
  %s12 = ssub.s32 1, %s10
  %s13 = scalar_select 0, %s12, %s10
  %s14 = sshll.u32 %s0, 4
  %s15 = int_to_ptr.vmem [resolvable:$true] %s14
  %17 = dma.vmem_to_smem %s15, 16, [#allocation5], [#allocation4]
  %18 = dma.done [#allocation4], 16
  %19 = sfence
  $region1: #{tpu_custom_call.1} parent=0
    #allocation6 [shape = 'u8[4096]{0}', space=vmem, size = 0x1000, scoped, tag = 'input window, operand 1, single buffered']
    #allocation7 [shape = 's32[1]{0}', space=sflag, size = 0x4, scoped, tag = 'scoped memory for tpu_custom_call.1']
    #allocation8 [shape = 'u8[4096]{0}', space=vmem, size = 0x1000, scoped, tag = 'input window, operand 2, single buffered']
    #allocation9 [shape = 's32[1]{0}', space=sflag, size = 0x4, scoped, tag = 'scoped memory for tpu_custom_call.1']
    #allocation10 [shape = 'u8[512]{0}', space=vmem, size = 0x400, scoped, tag = 'input window, operand 4, single buffered']
    %20 = vsyncpa [#allocation7], 0
    %21 = vsyncpa [#allocation9], 0
    // Predicated region
    $region2: #{tpu_custom_call.1} parent=1 // pred_check
      _
    $region3: #{tpu_custom_call.1} parent=1 // pred_check_branch
      %23 = sbr.rel (0) target = $region5
    $region4: #{tpu_custom_call.1} parent=1 // pred_region
      %s25 = ssub.s32 128, 128
      %26 = vsyncadd [#allocation7], %s25
      %s27 = sshll.u32 [#allocation6], 4
      %s28 = int_to_ptr.vmem [resolvable:$true] %s27
      %33 = dma.hbm_to_vmem [thread:$0]  %s1, 128, %s28, [#allocation7], 64, 64, 4
    $region5: #{tpu_custom_call.1} parent=1 // pred_fallthru
      _
    // Predicated region
    $region6: #{tpu_custom_call.1} parent=1 // pred_check
      _
    $region7: #{tpu_custom_call.1} parent=1 // pred_check_branch
      %35 = sbr.rel (0) target = $region9
    $region8: #{tpu_custom_call.1} parent=1 // pred_region
      %s37 = ssub.s32 128, 128
      %38 = vsyncadd [#allocation9], %s37
      %s39 = sshll.u32 [#allocation8], 4
      %s40 = int_to_ptr.vmem [resolvable:$true] %s39
      %45 = dma.hbm_to_vmem [thread:$0]  %s2, 128, %s40, [#allocation9], 64, 64, 4
    $region9: #{tpu_custom_call.1} parent=1 // pred_fallthru
      _
    // Predicated region
    $region10: #{tpu_custom_call.1} parent=1 // pred_check
      _
    $region11: #{tpu_custom_call.1} parent=1 // pred_check_branch
      %47 = sbr.rel (0) target = $region13
    $region12: #{tpu_custom_call.1} parent=1 // pred_region
      _
    $region13: #{tpu_custom_call.1} parent=1 // pred_fallthru
      _
    // Predicated region
    $region14: #{tpu_custom_call.1} parent=1 // pred_check
      _
    $region15: #{tpu_custom_call.1} parent=1 // pred_check_branch
      %49 = sbr.rel (0) target = $region17
    $region16: #{tpu_custom_call.1} parent=1 // pred_region
      %s51 = ssub.s32 16, 16
      %52 = vsyncadd [#allocation9], %s51
      %s54 = sshll.u32 [#allocation10], 4
      %s55 = int_to_ptr.vmem [resolvable:$true] %s54
      %57 = dma.hbm_to_vmem [thread:$0]  %s4, 16, %s55, [#allocation9]
    $region17: #{tpu_custom_call.1} parent=1 // pred_fallthru
      _
    // Predicated region
    $region18: #{tpu_custom_call.1} parent=1 // pred_check
      _
    $region19: #{tpu_custom_call.1} parent=1 // pred_check_branch
      %59 = sbr.rel (0) target = $region21
    $region20: #{tpu_custom_call.1} parent=1 // pred_region
      _
    $region21: #{tpu_custom_call.1} parent=1 // pred_fallthru
      _
    // Predicated region
    $region22: #{tpu_custom_call.1} parent=1 // pred_check
      _
    $region23: #{tpu_custom_call.1} parent=1 // pred_check_branch
      %61 = sbr.rel (0) target = $region25
    $region24: #{tpu_custom_call.1} parent=1 // pred_region
      _
    $region25: #{tpu_custom_call.1} parent=1 // pred_fallthru
      _
    // Predicated region
    $region26: #{tpu_custom_call.1} parent=1 // pred_check
      _
    $region27: #{tpu_custom_call.1} parent=1 // pred_check_branch
      %63 = sbr.rel (0) target = $region29
    $region28: #{tpu_custom_call.1} parent=1 // pred_region
      _
    $region29: #{tpu_custom_call.1} parent=1 // pred_fallthru
      _
    // Predicated region
    $region30: #{tpu_custom_call.1} parent=1 // pred_check
      _
    $region31: #{tpu_custom_call.1} parent=1 // pred_check_branch
      %65 = sbr.rel (0) target = $region33
    $region32: #{tpu_custom_call.1} parent=1 // pred_region
      _
    $region33: #{tpu_custom_call.1} parent=1 // pred_fallthru
      _
    // Predicated region
    $region34: #{tpu_custom_call.1} parent=1 // pred_check
      _
    $region35: #{tpu_custom_call.1} parent=1 // pred_check_branch
      %67 = sbr.rel (0) target = $region37
    $region36: #{tpu_custom_call.1} parent=1 // pred_region
      %68 = dma.done [#allocation7], 128
    $region37: #{tpu_custom_call.1} parent=1 // pred_fallthru
      _
    // Predicated region
    $region38: #{tpu_custom_call.1} parent=1 // pred_check
      _
    $region39: #{tpu_custom_call.1} parent=1 // pred_check_branch
      %70 = sbr.rel (0) target = $region41
    $region40: #{tpu_custom_call.1} parent=1 // pred_region
      %71 = dma.done [#allocation9], 128
    $region41: #{tpu_custom_call.1} parent=1 // pred_fallthru
      _
    // Predicated region
    $region42: #{tpu_custom_call.1} parent=1 // pred_check
      _
    $region43: #{tpu_custom_call.1} parent=1 // pred_check_branch
      %73 = sbr.rel (0) target = $region45
    $region44: #{tpu_custom_call.1} parent=1 // pred_region
      %74 = dma.done [#allocation9], 16
    $region45: #{tpu_custom_call.1} parent=1 // pred_fallthru
      _
    %v76 = vld [vmem:[#allocation6] sm:$0xf]
    %v77 = vld [vmem:[#allocation6 + $0x4] sm:$0xf]
    %v78 = vld [vmem:[#allocation8] sm:$0xf]
    %v79 = vld [vmem:[#allocation8 + $0x4] sm:$0xf]
    %v80 = vld [vmem:[#allocation10] sm:$0x1]
    %v82 = vlaneseq
    %v83 = vshrl.u32 %v82, 7
    %v84 = vsub.s32 0, %v83
    %v85 = vrot.slane %v80, %v84
    %v89 = vunpack.c.l.b16 %v76
    %v90 = vunpack.c.l.b16 %v77
    %v91 = vpack.c.b16 %v90, %v89
    %v94 = vunpack.c.l.b16 %v78
    %v95 = vunpack.c.l.b16 %v79
    %v96 = vpack.c.b16 %v95, %v94
    %vm98 = vcmask 130048
    %v100 = vsel %vm98, %v91, 0
    %102 = vmatprep.subr.bf16.mxu0 0
    %103 = vmatpush1.bf16.msra.mxu0 %v96
    %104 = vmatprep.subr.bf16.mxu0 0
    %105 = vmatpush1.bf16.msra.mxu0 0
    %106 = vmatprep.subr.bf16.mxu0 0
    %107 = vmatpush1.bf16.msra.mxu0 0
    %108 = vmatprep.subr.bf16.mxu0 0
    %109 = vmatpush1.bf16.msra.mxu0 0
    %110 = vmatprep.subr.bf16.mxu0 0
    %111 = vmatpush1.bf16.msra.mxu0 0
    %112 = vmatprep.subr.bf16.mxu0 0
    %113 = vmatpush1.bf16.msra.mxu0 0
    %114 = vmatprep.subr.bf16.mxu0 0
    %115 = vmatpush1.bf16.msra.mxu0 0
    %116 = vmatprep.subr.bf16.mxu0 0
    %117 = vmatpush1.bf16.msra.mxu0 0
    %118 = vmatprep.subr.bf16.mxu0 0
    %119 = vmatpush1.bf16.msra.mxu0 0
    %120 = vmatprep.subr.bf16.mxu0 0
    %121 = vmatpush1.bf16.msra.mxu0 0
    %122 = vmatprep.subr.bf16.mxu0 0
    %123 = vmatpush1.bf16.msra.mxu0 0
    %124 = vmatprep.subr.bf16.mxu0 0
    %125 = vmatpush1.bf16.msra.mxu0 0
    %126 = vmatprep.subr.bf16.mxu0 0
    %127 = vmatpush1.bf16.msra.mxu0 0
    %128 = vmatprep.subr.bf16.mxu0 0
    %129 = vmatpush1.bf16.msra.mxu0 0
    %130 = vmatprep.subr.bf16.mxu0 0
    %131 = vmatpush1.bf16.msra.mxu0 0
    %132 = vmatprep.subr.bf16.mxu0 0
    %133 = vmatpush1.bf16.msra.mxu0 0
    %134 = vmatprep.mubr.bf16.mxu0 0
    %135 = vmatmul.mubr.bf16.gmra.mrb[0].mxu0 %v100
    %v136 = vpop.f32.mrb[0].mxu0
    %v137 = vadd.f32 %v85, %v136
    %v138 = vpop.f32.mrb[0].mxu0
    %v139 = vpop.f32.mrb[0].mxu0
    %v140 = vadd.f32 %v85, %v139
    %v141 = vpop.f32.mrb[0].mxu0
    %142 = vdwg.mxu0
    %143 = vst [vmem:[#allocation2] sm:$0xff] %v137
    %144 = vst [vmem:[#allocation2 + $0x8] sm:$0xff] %v140
    %v145 = vld [vmem:[%s3] sm:$0xf]
    %v146 = vld [vmem:[%s3 + $0x4] sm:$0xf]
    %v147 = vld [vmem:[%s3 + $0x8] sm:$0xf]
    %v148 = vld [vmem:[%s3 + $0xc] sm:$0xf]
    %v149 = vld [vmem:[#allocation2] sm:$0x3]
    %v154 = vunpack.c.l.b16 %v145
    %v155 = vunpack.c.l.b16 %v146
    %v156 = vunpack.c.l.b16 %v147
    %v157 = vunpack.c.l.b16 %v148
    %v158 = vpack.c.b16 %v155, %v154
    %v159 = vpack.c.b16 %v157, %v156
    %vm162 = vcmask 261120
    %v164 = vsel %vm162, 0, 0
    %166 = vmatprep.subr.bf16.mxu0 0
    %167 = vmatpush1.bf16.msra.mxu0 %v158
    %168 = vmatprep.subr.bf16.mxu0 0
    %169 = vmatpush1.bf16.msra.mxu0 %v159
    %170 = vmatprep.subr.bf16.mxu0 0
    %171 = vmatpush1.bf16.msra.mxu0 0
    %172 = vmatprep.subr.bf16.mxu0 0
    %173 = vmatpush1.bf16.msra.mxu0 0
    %174 = vmatprep.subr.bf16.mxu0 0
    %175 = vmatpush1.bf16.msra.mxu0 0
    %176 = vmatprep.subr.bf16.mxu0 0
    %177 = vmatpush1.bf16.msra.mxu0 0
    %178 = vmatprep.subr.bf16.mxu0 0
    %179 = vmatpush1.bf16.msra.mxu0 0
    %180 = vmatprep.subr.bf16.mxu0 0
    %181 = vmatpush1.bf16.msra.mxu0 0
    %182 = vmatprep.subr.bf16.mxu0 0
    %183 = vmatpush1.bf16.msra.mxu0 0
    %184 = vmatprep.subr.bf16.mxu0 0
    %185 = vmatpush1.bf16.msra.mxu0 0
    %186 = vmatprep.subr.bf16.mxu0 0
    %187 = vmatpush1.bf16.msra.mxu0 0
    %188 = vmatprep.subr.bf16.mxu0 0
    %189 = vmatpush1.bf16.msra.mxu0 0
    %190 = vmatprep.subr.bf16.mxu0 0
    %191 = vmatpush1.bf16.msra.mxu0 0
    %192 = vmatprep.subr.bf16.mxu0 0
    %193 = vmatpush1.bf16.msra.mxu0 0
    %194 = vmatprep.subr.bf16.mxu0 0
    %195 = vmatpush1.bf16.msra.mxu0 0
    %196 = vmatprep.subr.bf16.mxu0 0
    %197 = vmatpush1.bf16.msra.mxu0 0
    %198 = vmatprep.mubr.bf16.mxu0 0
    %199 = vmatmul.mubr.bf16.gmra.mrb[0].mxu0 %v164
    %v200 = vpop.f32.mrb[0].mxu0
    %v201 = vadd.f32 0.0, %v200
    %v202 = vpop.f32.mrb[0].mxu0
    %v203 = vpop.f32.mrb[0].mxu0
    %v204 = vpop.f32.mrb[0].mxu0
    %205 = vdwg.mxu0
    %v206 = vadd.f32 %v149, %v201
    %v207 = vxor.u32 %v206, 2147483648
    %v208 = vmul.f32 %v207, 1.442695
    %v209 = vpow.pop %v208
    %v210 = vadd.f32 %v209, 1.0
    %v211 = vrcp.pop %v210
    %v212 = vmul.f32 1.0, %v211
    %v213 = vtanh.pop %v206
    %v214 = vmul.f32 %v212, 0.0
    %216 = vrot.lane.b32.xlu0 %v213, 64
    %v217 = vpop.permute.xlu0 %216
    %v219 = vmul.f32 %v212, %v217
    %221 = vrot.lane.b32.xlu0 %v219, 32
    %v222 = vpop.permute.xlu0 %221
    %v224 = vadd.f32 %v214, %v222
    %v225 = vtanh.pop %v224
    %227 = vrot.lane.b32.xlu0 %v225, 64
    %v228 = vpop.permute.xlu0 %227
    %v230 = vmul.f32 %v212, %v228
    %232 = vrot.lane.b32.xlu0 %v230, 32
    %v233 = vpop.permute.xlu0 %232
    %vm235 = vcmask 254976
    %236 = vst.msk [vmem:[#allocation3] sm:$0x3] %vm235, %v233
    %v237 = vld [vmem:[#allocation2 + $0x2] sm:$0x3]
    %v238 = vpack.c.bf16 %v230, %v230
    %240 = vrot.lane.b32.xlu0 %v238, 32
    %v241 = vpop.permute.xlu0 %240
    %v243 = vsel %vm162, %v241, 0
    %245 = vmatprep.subr.bf16.mxu0 0
    %246 = vmatpush1.bf16.msra.mxu0 %v158
    %247 = vmatprep.subr.bf16.mxu0 0
    %248 = vmatpush1.bf16.msra.mxu0 %v159
    %249 = vmatprep.subr.bf16.mxu0 0
    %250 = vmatpush1.bf16.msra.mxu0 0
    %251 = vmatprep.subr.bf16.mxu0 0
    %252 = vmatpush1.bf16.msra.mxu0 0
    %253 = vmatprep.subr.bf16.mxu0 0
    %254 = vmatpush1.bf16.msra.mxu0 0
    %255 = vmatprep.subr.bf16.mxu0 0
    %256 = vmatpush1.bf16.msra.mxu0 0
    %257 = vmatprep.subr.bf16.mxu0 0
    %258 = vmatpush1.bf16.msra.mxu0 0
    %259 = vmatprep.subr.bf16.mxu0 0
    %260 = vmatpush1.bf16.msra.mxu0 0
    %261 = vmatprep.subr.bf16.mxu0 0
    %262 = vmatpush1.bf16.msra.mxu0 0
    %263 = vmatprep.subr.bf16.mxu0 0
    %264 = vmatpush1.bf16.msra.mxu0 0
    %265 = vmatprep.subr.bf16.mxu0 0
    %266 = vmatpush1.bf16.msra.mxu0 0
    %267 = vmatprep.subr.bf16.mxu0 0
    %268 = vmatpush1.bf16.msra.mxu0 0
    %269 = vmatprep.subr.bf16.mxu0 0
    %270 = vmatpush1.bf16.msra.mxu0 0
    %271 = vmatprep.subr.bf16.mxu0 0
    %272 = vmatpush1.bf16.msra.mxu0 0
    %273 = vmatprep.subr.bf16.mxu0 0
    %274 = vmatpush1.bf16.msra.mxu0 0
    %275 = vmatprep.subr.bf16.mxu0 0
    %276 = vmatpush1.bf16.msra.mxu0 0
    %277 = vmatprep.mubr.bf16.mxu0 0
    %278 = vmatmul.mubr.bf16.gmra.mrb[0].mxu0 %v243
    %v279 = vpop.f32.mrb[0].mxu0
    %v280 = vadd.f32 0.0, %v279
    %v281 = vpop.f32.mrb[0].mxu0
    %v282 = vpop.f32.mrb[0].mxu0
    %v283 = vpop.f32.mrb[0].mxu0
    %284 = vdwg.mxu0
    %v285 = vadd.f32 %v237, %v280
    %v286 = vxor.u32 %v285, 2147483648
    %v287 = vmul.f32 %v286, 1.442695
    %v288 = vpow.pop %v287
    %v289 = vadd.f32 %v288, 1.0
    %v290 = vrcp.pop %v289
    %v291 = vmul.f32 1.0, %v290
    %v292 = vtanh.pop %v285
    %v293 = vmul.f32 %v291, %v224
    %295 = vrot.lane.b32.xlu0 %v292, 64
    %v296 = vpop.permute.xlu0 %295
    %v298 = vmul.f32 %v291, %v296
    %300 = vrot.lane.b32.xlu0 %v298, 32
    %v301 = vpop.permute.xlu0 %300
    %v303 = vadd.f32 %v293, %v301
    %v304 = vtanh.pop %v303
    %306 = vrot.lane.b32.xlu0 %v304, 64
    %v307 = vpop.permute.xlu0 %306
    %v309 = vmul.f32 %v291, %v307
    %311 = vrot.lane.b32.xlu0 %v309, 32
    %v312 = vpop.permute.xlu0 %311
    %s314 = scalar_lea.vmem [#allocation3], 2
    %315 = vst.msk [vmem:[%s314] sm:$0x3] %vm235, %v312
    %v316 = vld [vmem:[#allocation2 + $0x4] sm:$0x3]
    %v317 = vpack.c.bf16 %v309, %v309
    %319 = vrot.lane.b32.xlu0 %v317, 32
    %v320 = vpop.permute.xlu0 %319
    %v322 = vsel %vm162, %v320, 0
    %324 = vmatprep.subr.bf16.mxu0 0
    %325 = vmatpush1.bf16.msra.mxu0 %v158
    %326 = vmatprep.subr.bf16.mxu0 0
    %327 = vmatpush1.bf16.msra.mxu0 %v159
    %328 = vmatprep.subr.bf16.mxu0 0
    %329 = vmatpush1.bf16.msra.mxu0 0
    %330 = vmatprep.subr.bf16.mxu0 0
    %331 = vmatpush1.bf16.msra.mxu0 0
    %332 = vmatprep.subr.bf16.mxu0 0
    %333 = vmatpush1.bf16.msra.mxu0 0
    %334 = vmatprep.subr.bf16.mxu0 0
    %335 = vmatpush1.bf16.msra.mxu0 0
    %336 = vmatprep.subr.bf16.mxu0 0
    %337 = vmatpush1.bf16.msra.mxu0 0
    %338 = vmatprep.subr.bf16.mxu0 0
    %339 = vmatpush1.bf16.msra.mxu0 0
    %340 = vmatprep.subr.bf16.mxu0 0
    %341 = vmatpush1.bf16.msra.mxu0 0
    %342 = vmatprep.subr.bf16.mxu0 0
    %343 = vmatpush1.bf16.msra.mxu0 0
    %344 = vmatprep.subr.bf16.mxu0 0
    %345 = vmatpush1.bf16.msra.mxu0 0
    %346 = vmatprep.subr.bf16.mxu0 0
    %347 = vmatpush1.bf16.msra.mxu0 0
    %348 = vmatprep.subr.bf16.mxu0 0
    %349 = vmatpush1.bf16.msra.mxu0 0
    %350 = vmatprep.subr.bf16.mxu0 0
    %351 = vmatpush1.bf16.msra.mxu0 0
    %352 = vmatprep.subr.bf16.mxu0 0
    %353 = vmatpush1.bf16.msra.mxu0 0
    %354 = vmatprep.subr.bf16.mxu0 0
    %355 = vmatpush1.bf16.msra.mxu0 0
    %356 = vmatprep.mubr.bf16.mxu0 0
    %357 = vmatmul.mubr.bf16.gmra.mrb[0].mxu0 %v322
    %v358 = vpop.f32.mrb[0].mxu0
    %v359 = vadd.f32 0.0, %v358
    %v360 = vpop.f32.mrb[0].mxu0
    %v361 = vpop.f32.mrb[0].mxu0
    %v362 = vpop.f32.mrb[0].mxu0
    %363 = vdwg.mxu0
    %v364 = vadd.f32 %v316, %v359
    %v365 = vxor.u32 %v364, 2147483648
    %v366 = vmul.f32 %v365, 1.442695
    %v367 = vpow.pop %v366
    %v368 = vadd.f32 %v367, 1.0
    %v369 = vrcp.pop %v368
    %v370 = vmul.f32 1.0, %v369
    %v371 = vtanh.pop %v364
    %v372 = vmul.f32 %v370, %v303
    %374 = vrot.lane.b32.xlu0 %v371, 64
    %v375 = vpop.permute.xlu0 %374
    %v377 = vmul.f32 %v370, %v375
    %379 = vrot.lane.b32.xlu0 %v377, 32
    %v380 = vpop.permute.xlu0 %379
    %v382 = vadd.f32 %v372, %v380
    %v383 = vtanh.pop %v382
    %385 = vrot.lane.b32.xlu0 %v383, 64
    %v386 = vpop.permute.xlu0 %385
    %v388 = vmul.f32 %v370, %v386
    %390 = vrot.lane.b32.xlu0 %v388, 32
    %v391 = vpop.permute.xlu0 %390
    %s393 = scalar_lea.vmem [#allocation3], 4
    %394 = vst.msk [vmem:[%s393] sm:$0x3] %vm235, %v391
    %v395 = vld [vmem:[#allocation2 + $0x6] sm:$0x3]
    %v396 = vpack.c.bf16 %v388, %v388
    %398 = vrot.lane.b32.xlu0 %v396, 32
    %v399 = vpop.permute.xlu0 %398
    %v401 = vsel %vm162, %v399, 0
    %403 = vmatprep.subr.bf16.mxu0 0
    %404 = vmatpush1.bf16.msra.mxu0 %v158
    %405 = vmatprep.subr.bf16.mxu0 0
    %406 = vmatpush1.bf16.msra.mxu0 %v159
    %407 = vmatprep.subr.bf16.mxu0 0
    %408 = vmatpush1.bf16.msra.mxu0 0
    %409 = vmatprep.subr.bf16.mxu0 0
    %410 = vmatpush1.bf16.msra.mxu0 0
    %411 = vmatprep.subr.bf16.mxu0 0
    %412 = vmatpush1.bf16.msra.mxu0 0
    %413 = vmatprep.subr.bf16.mxu0 0
    %414 = vmatpush1.bf16.msra.mxu0 0
    %415 = vmatprep.subr.bf16.mxu0 0
    %416 = vmatpush1.bf16.msra.mxu0 0
    %417 = vmatprep.subr.bf16.mxu0 0
    %418 = vmatpush1.bf16.msra.mxu0 0
    %419 = vmatprep.subr.bf16.mxu0 0
    %420 = vmatpush1.bf16.msra.mxu0 0
    %421 = vmatprep.subr.bf16.mxu0 0
    %422 = vmatpush1.bf16.msra.mxu0 0
    %423 = vmatprep.subr.bf16.mxu0 0
    %424 = vmatpush1.bf16.msra.mxu0 0
    %425 = vmatprep.subr.bf16.mxu0 0
    %426 = vmatpush1.bf16.msra.mxu0 0
    %427 = vmatprep.subr.bf16.mxu0 0
    %428 = vmatpush1.bf16.msra.mxu0 0
    %429 = vmatprep.subr.bf16.mxu0 0
    %430 = vmatpush1.bf16.msra.mxu0 0
    %431 = vmatprep.subr.bf16.mxu0 0
    %432 = vmatpush1.bf16.msra.mxu0 0
    %433 = vmatprep.subr.bf16.mxu0 0
    %434 = vmatpush1.bf16.msra.mxu0 0
    %435 = vmatprep.mubr.bf16.mxu0 0
    %436 = vmatmul.mubr.bf16.gmra.mrb[0].mxu0 %v401
    %v437 = vpop.f32.mrb[0].mxu0
    %v438 = vadd.f32 0.0, %v437
    %v439 = vpop.f32.mrb[0].mxu0
    %v440 = vpop.f32.mrb[0].mxu0
    %v441 = vpop.f32.mrb[0].mxu0
    %442 = vdwg.mxu0
    %v443 = vadd.f32 %v395, %v438
    %v444 = vxor.u32 %v443, 2147483648
    %v445 = vmul.f32 %v444, 1.442695
    %v446 = vpow.pop %v445
    %v447 = vadd.f32 %v446, 1.0
    %v448 = vrcp.pop %v447
    %v449 = vmul.f32 1.0, %v448
    %v450 = vtanh.pop %v443
    %v451 = vmul.f32 %v449, %v382
    %453 = vrot.lane.b32.xlu0 %v450, 64
    %v454 = vpop.permute.xlu0 %453
    %v456 = vmul.f32 %v449, %v454
    %458 = vrot.lane.b32.xlu0 %v456, 32
    %v459 = vpop.permute.xlu0 %458
    %v461 = vadd.f32 %v451, %v459
    %v462 = vtanh.pop %v461
    %464 = vrot.lane.b32.xlu0 %v462, 64
    %v465 = vpop.permute.xlu0 %464
    %v467 = vmul.f32 %v449, %v465
    %469 = vrot.lane.b32.xlu0 %v467, 32
    %v470 = vpop.permute.xlu0 %469
    %s472 = scalar_lea.vmem [#allocation3], 6
    %473 = vst.msk [vmem:[%s472] sm:$0x3] %vm235, %v470
    %v474 = vld [vmem:[#allocation2 + $0x8] sm:$0x3]
    %v475 = vpack.c.bf16 %v467, %v467
    %477 = vrot.lane.b32.xlu0 %v475, 32
    %v478 = vpop.permute.xlu0 %477
    %v480 = vsel %vm162, %v478, 0
    %482 = vmatprep.subr.bf16.mxu0 0
    %483 = vmatpush1.bf16.msra.mxu0 %v158
    %484 = vmatprep.subr.bf16.mxu0 0
    %485 = vmatpush1.bf16.msra.mxu0 %v159
    %486 = vmatprep.subr.bf16.mxu0 0
    %487 = vmatpush1.bf16.msra.mxu0 0
    %488 = vmatprep.subr.bf16.mxu0 0
    %489 = vmatpush1.bf16.msra.mxu0 0
    %490 = vmatprep.subr.bf16.mxu0 0
    %491 = vmatpush1.bf16.msra.mxu0 0
    %492 = vmatprep.subr.bf16.mxu0 0
    %493 = vmatpush1.bf16.msra.mxu0 0
    %494 = vmatprep.subr.bf16.mxu0 0
    %495 = vmatpush1.bf16.msra.mxu0 0
    %496 = vmatprep.subr.bf16.mxu0 0
    %497 = vmatpush1.bf16.msra.mxu0 0
    %498 = vmatprep.subr.bf16.mxu0 0
    %499 = vmatpush1.bf16.msra.mxu0 0
    %500 = vmatprep.subr.bf16.mxu0 0
    %501 = vmatpush1.bf16.msra.mxu0 0
    %502 = vmatprep.subr.bf16.mxu0 0
    %503 = vmatpush1.bf16.msra.mxu0 0
    %504 = vmatprep.subr.bf16.mxu0 0
    %505 = vmatpush1.bf16.msra.mxu0 0
    %506 = vmatprep.subr.bf16.mxu0 0
    %507 = vmatpush1.bf16.msra.mxu0 0
    %508 = vmatprep.subr.bf16.mxu0 0
    %509 = vmatpush1.bf16.msra.mxu0 0
    %510 = vmatprep.subr.bf16.mxu0 0
    %511 = vmatpush1.bf16.msra.mxu0 0
    %512 = vmatprep.subr.bf16.mxu0 0
    %513 = vmatpush1.bf16.msra.mxu0 0
    %514 = vmatprep.mubr.bf16.mxu0 0
    %515 = vmatmul.mubr.bf16.gmra.mrb[0].mxu0 %v480
    %v516 = vpop.f32.mrb[0].mxu0
    %v517 = vadd.f32 0.0, %v516
    %v518 = vpop.f32.mrb[0].mxu0
    %v519 = vpop.f32.mrb[0].mxu0
    %v520 = vpop.f32.mrb[0].mxu0
    %521 = vdwg.mxu0
    %v522 = vadd.f32 %v474, %v517
    %v523 = vxor.u32 %v522, 2147483648
    %v524 = vmul.f32 %v523, 1.442695
    %v525 = vpow.pop %v524
    %v526 = vadd.f32 %v525, 1.0
    %v527 = vrcp.pop %v526
    %v528 = vmul.f32 1.0, %v527
    %v529 = vtanh.pop %v522
    %v530 = vmul.f32 %v528, %v461
    %532 = vrot.lane.b32.xlu0 %v529, 64
    %v533 = vpop.permute.xlu0 %532
    %v535 = vmul.f32 %v528, %v533
    %537 = vrot.lane.b32.xlu0 %v535, 32
    %v538 = vpop.permute.xlu0 %537
    %v540 = vadd.f32 %v530, %v538
    %v541 = vtanh.pop %v540
    %543 = vrot.lane.b32.xlu0 %v541, 64
    %v544 = vpop.permute.xlu0 %543
    %v546 = vmul.f32 %v528, %v544
    %548 = vrot.lane.b32.xlu0 %v546, 32
    %v549 = vpop.permute.xlu0 %548
    %s551 = scalar_lea.vmem [#allocation3], 8
    %552 = vst.msk [vmem:[%s551] sm:$0x3] %vm235, %v549
    %v553 = vld [vmem:[#allocation2 + $0xa] sm:$0x3]
    %v554 = vpack.c.bf16 %v546, %v546
    %556 = vrot.lane.b32.xlu0 %v554, 32
    %v557 = vpop.permute.xlu0 %556
    %v559 = vsel %vm162, %v557, 0
    %561 = vmatprep.subr.bf16.mxu0 0
    %562 = vmatpush1.bf16.msra.mxu0 %v158
    %563 = vmatprep.subr.bf16.mxu0 0
    %564 = vmatpush1.bf16.msra.mxu0 %v159
    %565 = vmatprep.subr.bf16.mxu0 0
    %566 = vmatpush1.bf16.msra.mxu0 0
    %567 = vmatprep.subr.bf16.mxu0 0
    %568 = vmatpush1.bf16.msra.mxu0 0
    %569 = vmatprep.subr.bf16.mxu0 0
    %570 = vmatpush1.bf16.msra.mxu0 0
    %571 = vmatprep.subr.bf16.mxu0 0
    %572 = vmatpush1.bf16.msra.mxu0 0
    %573 = vmatprep.subr.bf16.mxu0 0
    %574 = vmatpush1.bf16.msra.mxu0 0
    %575 = vmatprep.subr.bf16.mxu0 0
    %576 = vmatpush1.bf16.msra.mxu0 0
    %577 = vmatprep.subr.bf16.mxu0 0
    %578 = vmatpush1.bf16.msra.mxu0 0
    %579 = vmatprep.subr.bf16.mxu0 0
    %580 = vmatpush1.bf16.msra.mxu0 0
    %581 = vmatprep.subr.bf16.mxu0 0
    %582 = vmatpush1.bf16.msra.mxu0 0
    %583 = vmatprep.subr.bf16.mxu0 0
    %584 = vmatpush1.bf16.msra.mxu0 0
    %585 = vmatprep.subr.bf16.mxu0 0
    %586 = vmatpush1.bf16.msra.mxu0 0
    %587 = vmatprep.subr.bf16.mxu0 0
    %588 = vmatpush1.bf16.msra.mxu0 0
    %589 = vmatprep.subr.bf16.mxu0 0
    %590 = vmatpush1.bf16.msra.mxu0 0
    %591 = vmatprep.subr.bf16.mxu0 0
    %592 = vmatpush1.bf16.msra.mxu0 0
    %593 = vmatprep.mubr.bf16.mxu0 0
    %594 = vmatmul.mubr.bf16.gmra.mrb[0].mxu0 %v559
    %v595 = vpop.f32.mrb[0].mxu0
    %v596 = vadd.f32 0.0, %v595
    %v597 = vpop.f32.mrb[0].mxu0
    %v598 = vpop.f32.mrb[0].mxu0
    %v599 = vpop.f32.mrb[0].mxu0
    %600 = vdwg.mxu0
    %v601 = vadd.f32 %v553, %v596
    %v602 = vxor.u32 %v601, 2147483648
    %v603 = vmul.f32 %v602, 1.442695
    %v604 = vpow.pop %v603
    %v605 = vadd.f32 %v604, 1.0
    %v606 = vrcp.pop %v605
    %v607 = vmul.f32 1.0, %v606
    %v608 = vtanh.pop %v601
    %v609 = vmul.f32 %v607, %v540
    %611 = vrot.lane.b32.xlu0 %v608, 64
    %v612 = vpop.permute.xlu0 %611
    %v614 = vmul.f32 %v607, %v612
    %616 = vrot.lane.b32.xlu0 %v614, 32
    %v617 = vpop.permute.xlu0 %616
    %v619 = vadd.f32 %v609, %v617
    %v620 = vtanh.pop %v619
    %622 = vrot.lane.b32.xlu0 %v620, 64
    %v623 = vpop.permute.xlu0 %622
    %v625 = vmul.f32 %v607, %v623
    %627 = vrot.lane.b32.xlu0 %v625, 32
    %v628 = vpop.permute.xlu0 %627
    %s630 = scalar_lea.vmem [#allocation3], 10
    %631 = vst.msk [vmem:[%s630] sm:$0x3] %vm235, %v628
    %v632 = vld [vmem:[#allocation2 + $0xc] sm:$0x3]
    %v633 = vpack.c.bf16 %v625, %v625
    %635 = vrot.lane.b32.xlu0 %v633, 32
    %v636 = vpop.permute.xlu0 %635
    %v638 = vsel %vm162, %v636, 0
    %640 = vmatprep.subr.bf16.mxu0 0
    %641 = vmatpush1.bf16.msra.mxu0 %v158
    %642 = vmatprep.subr.bf16.mxu0 0
    %643 = vmatpush1.bf16.msra.mxu0 %v159
    %644 = vmatprep.subr.bf16.mxu0 0
    %645 = vmatpush1.bf16.msra.mxu0 0
    %646 = vmatprep.subr.bf16.mxu0 0
    %647 = vmatpush1.bf16.msra.mxu0 0
    %648 = vmatprep.subr.bf16.mxu0 0
    %649 = vmatpush1.bf16.msra.mxu0 0
    %650 = vmatprep.subr.bf16.mxu0 0
    %651 = vmatpush1.bf16.msra.mxu0 0
    %652 = vmatprep.subr.bf16.mxu0 0
    %653 = vmatpush1.bf16.msra.mxu0 0
    %654 = vmatprep.subr.bf16.mxu0 0
    %655 = vmatpush1.bf16.msra.mxu0 0
    %656 = vmatprep.subr.bf16.mxu0 0
    %657 = vmatpush1.bf16.msra.mxu0 0
    %658 = vmatprep.subr.bf16.mxu0 0
    %659 = vmatpush1.bf16.msra.mxu0 0
    %660 = vmatprep.subr.bf16.mxu0 0
    %661 = vmatpush1.bf16.msra.mxu0 0
    %662 = vmatprep.subr.bf16.mxu0 0
    %663 = vmatpush1.bf16.msra.mxu0 0
    %664 = vmatprep.subr.bf16.mxu0 0
    %665 = vmatpush1.bf16.msra.mxu0 0
    %666 = vmatprep.subr.bf16.mxu0 0
    %667 = vmatpush1.bf16.msra.mxu0 0
    %668 = vmatprep.subr.bf16.mxu0 0
    %669 = vmatpush1.bf16.msra.mxu0 0
    %670 = vmatprep.subr.bf16.mxu0 0
    %671 = vmatpush1.bf16.msra.mxu0 0
    %672 = vmatprep.mubr.bf16.mxu0 0
    %673 = vmatmul.mubr.bf16.gmra.mrb[0].mxu0 %v638
    %v674 = vpop.f32.mrb[0].mxu0
    %v675 = vadd.f32 0.0, %v674
    %v676 = vpop.f32.mrb[0].mxu0
    %v677 = vpop.f32.mrb[0].mxu0
    %v678 = vpop.f32.mrb[0].mxu0
    %679 = vdwg.mxu0
    %v680 = vadd.f32 %v632, %v675
    %v681 = vxor.u32 %v680, 2147483648
    %v682 = vmul.f32 %v681, 1.442695
    %v683 = vpow.pop %v682
    %v684 = vadd.f32 %v683, 1.0
    %v685 = vrcp.pop %v684
    %v686 = vmul.f32 1.0, %v685
    %v687 = vtanh.pop %v680
    %v688 = vmul.f32 %v686, %v619
    %690 = vrot.lane.b32.xlu0 %v687, 64
    %v691 = vpop.permute.xlu0 %690
    %v693 = vmul.f32 %v686, %v691
    %695 = vrot.lane.b32.xlu0 %v693, 32
    %v696 = vpop.permute.xlu0 %695
    %v698 = vadd.f32 %v688, %v696
    %v699 = vtanh.pop %v698
    %701 = vrot.lane.b32.xlu0 %v699, 64
    %v702 = vpop.permute.xlu0 %701
    %v704 = vmul.f32 %v686, %v702
    %706 = vrot.lane.b32.xlu0 %v704, 32
    %v707 = vpop.permute.xlu0 %706
    %s709 = scalar_lea.vmem [#allocation3], 12
    %710 = vst.msk [vmem:[%s709] sm:$0x3] %vm235, %v707
    %v711 = vld [vmem:[#allocation2 + $0xe] sm:$0x3]
    %v712 = vpack.c.bf16 %v704, %v704
    %714 = vrot.lane.b32.xlu0 %v712, 32
    %v715 = vpop.permute.xlu0 %714
    %v717 = vsel %vm162, %v715, 0
    %719 = vmatprep.subr.bf16.mxu0 0
    %720 = vmatpush1.bf16.msra.mxu0 %v158
    %721 = vmatprep.subr.bf16.mxu0 0
    %722 = vmatpush1.bf16.msra.mxu0 %v159
    %723 = vmatprep.subr.bf16.mxu0 0
    %724 = vmatpush1.bf16.msra.mxu0 0
    %725 = vmatprep.subr.bf16.mxu0 0
    %726 = vmatpush1.bf16.msra.mxu0 0
    %727 = vmatprep.subr.bf16.mxu0 0
    %728 = vmatpush1.bf16.msra.mxu0 0
    %729 = vmatprep.subr.bf16.mxu0 0
    %730 = vmatpush1.bf16.msra.mxu0 0
    %731 = vmatprep.subr.bf16.mxu0 0
    %732 = vmatpush1.bf16.msra.mxu0 0
    %733 = vmatprep.subr.bf16.mxu0 0
    %734 = vmatpush1.bf16.msra.mxu0 0
    %735 = vmatprep.subr.bf16.mxu0 0
    %736 = vmatpush1.bf16.msra.mxu0 0
    %737 = vmatprep.subr.bf16.mxu0 0
    %738 = vmatpush1.bf16.msra.mxu0 0
    %739 = vmatprep.subr.bf16.mxu0 0
    %740 = vmatpush1.bf16.msra.mxu0 0
    %741 = vmatprep.subr.bf16.mxu0 0
    %742 = vmatpush1.bf16.msra.mxu0 0
    %743 = vmatprep.subr.bf16.mxu0 0
    %744 = vmatpush1.bf16.msra.mxu0 0
    %745 = vmatprep.subr.bf16.mxu0 0
    %746 = vmatpush1.bf16.msra.mxu0 0
    %747 = vmatprep.subr.bf16.mxu0 0
    %748 = vmatpush1.bf16.msra.mxu0 0
    %749 = vmatprep.subr.bf16.mxu0 0
    %750 = vmatpush1.bf16.msra.mxu0 0
    %751 = vmatprep.mubr.bf16.mxu0 0
    %752 = vmatmul.mubr.bf16.gmra.mrb[0].mxu0 %v717
    %v753 = vpop.f32.mrb[0].mxu0
    %v754 = vadd.f32 0.0, %v753
    %v755 = vpop.f32.mrb[0].mxu0
    %v756 = vpop.f32.mrb[0].mxu0
    %v757 = vpop.f32.mrb[0].mxu0
    %758 = vdwg.mxu0
    %v759 = vadd.f32 %v711, %v754
    %v760 = vxor.u32 %v759, 2147483648
    %v761 = vmul.f32 %v760, 1.442695
    %v762 = vpow.pop %v761
    %v763 = vadd.f32 %v762, 1.0
    %v764 = vrcp.pop %v763
    %v765 = vmul.f32 1.0, %v764
    %v766 = vtanh.pop %v759
    %v767 = vmul.f32 %v765, %v698
    %769 = vrot.lane.b32.xlu0 %v766, 64
    %v770 = vpop.permute.xlu0 %769
    %v772 = vmul.f32 %v765, %v770
    %774 = vrot.lane.b32.xlu0 %v772, 32
    %v775 = vpop.permute.xlu0 %774
    %v777 = vadd.f32 %v767, %v775
    %v778 = vtanh.pop %v777
    %780 = vrot.lane.b32.xlu0 %v778, 64
    %v781 = vpop.permute.xlu0 %780
    %v783 = vmul.f32 %v765, %v781
    %785 = vrot.lane.b32.xlu0 %v783, 32
    %v786 = vpop.permute.xlu0 %785
    %s788 = scalar_lea.vmem [#allocation3], 14
    %789 = vst.msk [vmem:[%s788] sm:$0x3] %vm235, %v786
    %v790 = vld [vmem:[%s5] sm:$0xf]
    %v791 = vld [vmem:[%s5 + $0x4] sm:$0xf]
    %v792 = vld [vmem:[%s5 + $0x8] sm:$0xf]
    %v793 = vld [vmem:[%s5 + $0xc] sm:$0xf]
    %v794 = vld [vmem:[%s6] sm:$0x1]
    %v795 = vld [vmem:[%s7] sm:$0xf]
    %v796 = vld [vmem:[%s7 + $0x4] sm:$0xf]
    %v797 = vld [vmem:[%s7 + $0x8] sm:$0xf]
    %v798 = vld [vmem:[%s7 + $0xc] sm:$0xf]
    %v799 = vld [vmem:[%s8] sm:$0x1]
    %v800 = vlaneseq
    %v801 = vshrl.u32 %v800, 7
    %s802 = sld [smem:[#allocation5]]
    %v803 = vstv %s802
    %vm804 = vcmp.lt.s32.totalorder %v801, %v803
    %v805 = vld [vmem:[#allocation3] sm:$0x1]
    %v806 = vld [vmem:[#allocation3 + $0x2] sm:$0x1]
    %v807 = vld [vmem:[#allocation3 + $0x4] sm:$0x1]
    %v808 = vld [vmem:[#allocation3 + $0x6] sm:$0x1]
    %v809 = vld [vmem:[#allocation3 + $0x8] sm:$0x1]
    %v810 = vld [vmem:[#allocation3 + $0xa] sm:$0x1]
    %v811 = vld [vmem:[#allocation3 + $0xc] sm:$0x1]
    %v812 = vld [vmem:[#allocation3 + $0xe] sm:$0x1]
    %v813 = vsel %vm804, 1, 0
    %vm814 = vcmp.eq.s32.totalorder %v813, 1
    %v823 = vrot.slane %v806, 7
    %vm824 = vcmask 1041409
    %v825 = vsel %vm824, %v823, %v805
    %v826 = vrot.slane %v807, 6
    %vm827 = vcmask 1042434
    %v828 = vsel %vm827, %v826, %v825
    %v829 = vrot.slane %v808, 5
    %vm830 = vcmask 1043459
    %v831 = vsel %vm830, %v829, %v828
    %v832 = vrot.slane %v809, 4
    %vm833 = vcmask 1044484
    %v834 = vsel %vm833, %v832, %v831
    %v835 = vrot.slane %v810, 3
    %vm836 = vcmask 1045509
    %v837 = vsel %vm836, %v835, %v834
    %v838 = vrot.slane %v811, 2
    %vm839 = vcmask 1046534
    %v840 = vsel %vm839, %v838, %v837
    %v841 = vrot.slane %v812, 1
    %vm842 = vcmask 1047559
    %v843 = vsel %vm842, %v841, %v840
    %v845 = vsel %vm814, %v843, 0.0
    %v846 = vpack.c.bf16 %v845, %v845
    %v848 = vlaneseq
    %v849 = vshrl.u32 %v848, 7
    %v850 = vsub.s32 0, %v849
    %v851 = vrot.slane %v794, %v850
    %v857 = vunpack.c.l.b16 %v790
    %v858 = vunpack.c.l.b16 %v791
    %v859 = vunpack.c.l.b16 %v792
    %v860 = vunpack.c.l.b16 %v793
    %v861 = vpack.c.b16 %v858, %v857
    %v862 = vpack.c.b16 %v860, %v859
    %v866 = vsel %vm162, %v846, 0
    %868 = vmatprep.subr.bf16.mxu0 0
    %869 = vmatpush1.bf16.msra.mxu0 %v861
    %870 = vmatprep.subr.bf16.mxu0 0
    %871 = vmatpush1.bf16.msra.mxu0 %v862
    %872 = vmatprep.subr.bf16.mxu0 0
    %873 = vmatpush1.bf16.msra.mxu0 0
    %874 = vmatprep.subr.bf16.mxu0 0
    %875 = vmatpush1.bf16.msra.mxu0 0
    %876 = vmatprep.subr.bf16.mxu0 0
    %877 = vmatpush1.bf16.msra.mxu0 0
    %878 = vmatprep.subr.bf16.mxu0 0
    %879 = vmatpush1.bf16.msra.mxu0 0
    %880 = vmatprep.subr.bf16.mxu0 0
    %881 = vmatpush1.bf16.msra.mxu0 0
    %882 = vmatprep.subr.bf16.mxu0 0
    %883 = vmatpush1.bf16.msra.mxu0 0
    %884 = vmatprep.subr.bf16.mxu0 0
    %885 = vmatpush1.bf16.msra.mxu0 0
    %886 = vmatprep.subr.bf16.mxu0 0
    %887 = vmatpush1.bf16.msra.mxu0 0
    %888 = vmatprep.subr.bf16.mxu0 0
    %889 = vmatpush1.bf16.msra.mxu0 0
    %890 = vmatprep.subr.bf16.mxu0 0
    %891 = vmatpush1.bf16.msra.mxu0 0
    %892 = vmatprep.subr.bf16.mxu0 0
    %893 = vmatpush1.bf16.msra.mxu0 0
    %894 = vmatprep.subr.bf16.mxu0 0
    %895 = vmatpush1.bf16.msra.mxu0 0
    %896 = vmatprep.subr.bf16.mxu0 0
    %897 = vmatpush1.bf16.msra.mxu0 0
    %898 = vmatprep.subr.bf16.mxu0 0
    %899 = vmatpush1.bf16.msra.mxu0 0
    %900 = vmatprep.mubr.bf16.mxu0 0
    %901 = vmatmul.mubr.bf16.gmra.mrb[0].mxu0 %v866
    %v902 = vpop.f32.mrb[0].mxu0
    %v903 = vadd.f32 %v851, %v902
    %v904 = vpop.f32.mrb[0].mxu0
    %v905 = vpop.f32.mrb[0].mxu0
    %v906 = vpop.f32.mrb[0].mxu0
    %907 = vdwg.mxu0
    %v908 = vmax.f32 %v903, 0.0
    %v909 = vpack.c.bf16 %v908, %v908
    %v911 = vlaneseq
    %v912 = vshrl.u32 %v911, 7
    %v913 = vsub.s32 0, %v912
    %v914 = vrot.slane %v799, %v913
    %v920 = vunpack.c.l.b16 %v795
    %v921 = vunpack.c.l.b16 %v796
    %v922 = vunpack.c.l.b16 %v797
    %v923 = vunpack.c.l.b16 %v798
    %v924 = vpack.c.b16 %v921, %v920
    %v925 = vpack.c.b16 %v923, %v922
    %v929 = vsel %vm162, %v909, 0
    %931 = vmatprep.subr.bf16.mxu0 0
    %932 = vmatpush1.bf16.msra.mxu0 %v924
    %933 = vmatprep.subr.bf16.mxu0 0
    %934 = vmatpush1.bf16.msra.mxu0 %v925
    %935 = vmatprep.subr.bf16.mxu0 0
    %936 = vmatpush1.bf16.msra.mxu0 0
    %937 = vmatprep.subr.bf16.mxu0 0
    %938 = vmatpush1.bf16.msra.mxu0 0
    %939 = vmatprep.subr.bf16.mxu0 0
    %940 = vmatpush1.bf16.msra.mxu0 0
    %941 = vmatprep.subr.bf16.mxu0 0
    %942 = vmatpush1.bf16.msra.mxu0 0
    %943 = vmatprep.subr.bf16.mxu0 0
    %944 = vmatpush1.bf16.msra.mxu0 0
    %945 = vmatprep.subr.bf16.mxu0 0
    %946 = vmatpush1.bf16.msra.mxu0 0
    %947 = vmatprep.subr.bf16.mxu0 0
    %948 = vmatpush1.bf16.msra.mxu0 0
    %949 = vmatprep.subr.bf16.mxu0 0
    %950 = vmatpush1.bf16.msra.mxu0 0
    %951 = vmatprep.subr.bf16.mxu0 0
    %952 = vmatpush1.bf16.msra.mxu0 0
    %953 = vmatprep.subr.bf16.mxu0 0
    %954 = vmatpush1.bf16.msra.mxu0 0
    %955 = vmatprep.subr.bf16.mxu0 0
    %956 = vmatpush1.bf16.msra.mxu0 0
    %957 = vmatprep.subr.bf16.mxu0 0
    %958 = vmatpush1.bf16.msra.mxu0 0
    %959 = vmatprep.subr.bf16.mxu0 0
    %960 = vmatpush1.bf16.msra.mxu0 0
    %961 = vmatprep.subr.bf16.mxu0 0
    %962 = vmatpush1.bf16.msra.mxu0 0
    %963 = vmatprep.mubr.bf16.mxu0 0
    %964 = vmatmul.mubr.bf16.gmra.mrb[0].mxu0 %v929
    %v965 = vpop.f32.mrb[0].mxu0
    %v966 = vadd.f32 %v914, %v965
    %v967 = vpop.f32.mrb[0].mxu0
    %v968 = vpop.f32.mrb[0].mxu0
    %v969 = vpop.f32.mrb[0].mxu0
    %970 = vdwg.mxu0
    %vm971 = vcmask 31744
    %972 = vst.msk [vmem:[%s9] sm:$0xff] %vm971, %v966
    %s973 = sld [smem:[#allocation5 + $0x1]]
    %v974 = vstv %s973
    %vm975 = vcmp.lt.s32.totalorder %v801, %v974
    %v976 = vld [vmem:[#allocation3 + $0x1] sm:$0x1]
    %v977 = vld [vmem:[#allocation3 + $0x3] sm:$0x1]
    %v978 = vld [vmem:[#allocation3 + $0x5] sm:$0x1]
    %v979 = vld [vmem:[#allocation3 + $0x7] sm:$0x1]
    %v980 = vld [vmem:[#allocation3 + $0x9] sm:$0x1]
    %v981 = vld [vmem:[#allocation3 + $0xb] sm:$0x1]
    %v982 = vld [vmem:[#allocation3 + $0xd] sm:$0x1]
    %v983 = vld [vmem:[#allocation3 + $0xf] sm:$0x1]
    %v984 = vsel %vm975, 1, 0
    %vm985 = vcmp.eq.s32.totalorder %v984, 1
    %v994 = vrot.slane %v977, 7
    %v995 = vsel %vm824, %v994, %v976
    %v996 = vrot.slane %v978, 6
    %v997 = vsel %vm827, %v996, %v995
    %v998 = vrot.slane %v979, 5
    %v999 = vsel %vm830, %v998, %v997
    %v1000 = vrot.slane %v980, 4
    %v1001 = vsel %vm833, %v1000, %v999
    %v1002 = vrot.slane %v981, 3
    %v1003 = vsel %vm836, %v1002, %v1001
    %v1004 = vrot.slane %v982, 2
    %v1005 = vsel %vm839, %v1004, %v1003
    %v1006 = vrot.slane %v983, 1
    %v1007 = vsel %vm842, %v1006, %v1005
    %v1009 = vsel %vm985, %v1007, 0.0
    %v1010 = vpack.c.bf16 %v1009, %v1009
    %v1012 = vsel %vm162, %v1010, 0
    %1014 = vmatprep.subr.bf16.mxu0 0
    %1015 = vmatpush1.bf16.msra.mxu0 %v861
    %1016 = vmatprep.subr.bf16.mxu0 0
    %1017 = vmatpush1.bf16.msra.mxu0 %v862
    %1018 = vmatprep.subr.bf16.mxu0 0
    %1019 = vmatpush1.bf16.msra.mxu0 0
    %1020 = vmatprep.subr.bf16.mxu0 0
    %1021 = vmatpush1.bf16.msra.mxu0 0
    %1022 = vmatprep.subr.bf16.mxu0 0
    %1023 = vmatpush1.bf16.msra.mxu0 0
    %1024 = vmatprep.subr.bf16.mxu0 0
    %1025 = vmatpush1.bf16.msra.mxu0 0
    %1026 = vmatprep.subr.bf16.mxu0 0
    %1027 = vmatpush1.bf16.msra.mxu0 0
    %1028 = vmatprep.subr.bf16.mxu0 0
    %1029 = vmatpush1.bf16.msra.mxu0 0
    %1030 = vmatprep.subr.bf16.mxu0 0
    %1031 = vmatpush1.bf16.msra.mxu0 0
    %1032 = vmatprep.subr.bf16.mxu0 0
    %1033 = vmatpush1.bf16.msra.mxu0 0
    %1034 = vmatprep.subr.bf16.mxu0 0
    %1035 = vmatpush1.bf16.msra.mxu0 0
    %1036 = vmatprep.subr.bf16.mxu0 0
    %1037 = vmatpush1.bf16.msra.mxu0 0
    %1038 = vmatprep.subr.bf16.mxu0 0
    %1039 = vmatpush1.bf16.msra.mxu0 0
    %1040 = vmatprep.subr.bf16.mxu0 0
    %1041 = vmatpush1.bf16.msra.mxu0 0
    %1042 = vmatprep.subr.bf16.mxu0 0
    %1043 = vmatpush1.bf16.msra.mxu0 0
    %1044 = vmatprep.subr.bf16.mxu0 0
    %1045 = vmatpush1.bf16.msra.mxu0 0
    %1046 = vmatprep.mubr.bf16.mxu0 0
    %1047 = vmatmul.mubr.bf16.gmra.mrb[0].mxu0 %v1012
    %v1048 = vpop.f32.mrb[0].mxu0
    %v1049 = vadd.f32 %v851, %v1048
    %v1050 = vpop.f32.mrb[0].mxu0
    %v1051 = vpop.f32.mrb[0].mxu0
    %v1052 = vpop.f32.mrb[0].mxu0
    %1053 = vdwg.mxu0
    %v1054 = vmax.f32 %v1049, 0.0
    %v1055 = vpack.c.bf16 %v1054, %v1054
    %v1057 = vsel %vm162, %v1055, 0
    %1059 = vmatprep.subr.bf16.mxu0 0
    %1060 = vmatpush1.bf16.msra.mxu0 %v924
    %1061 = vmatprep.subr.bf16.mxu0 0
    %1062 = vmatpush1.bf16.msra.mxu0 %v925
    %1063 = vmatprep.subr.bf16.mxu0 0
    %1064 = vmatpush1.bf16.msra.mxu0 0
    %1065 = vmatprep.subr.bf16.mxu0 0
    %1066 = vmatpush1.bf16.msra.mxu0 0
    %1067 = vmatprep.subr.bf16.mxu0 0
    %1068 = vmatpush1.bf16.msra.mxu0 0
    %1069 = vmatprep.subr.bf16.mxu0 0
    %1070 = vmatpush1.bf16.msra.mxu0 0
    %1071 = vmatprep.subr.bf16.mxu0 0
    %1072 = vmatpush1.bf16.msra.mxu0 0
    %1073 = vmatprep.subr.bf16.mxu0 0
    %1074 = vmatpush1.bf16.msra.mxu0 0
    %1075 = vmatprep.subr.bf16.mxu0 0
    %1076 = vmatpush1.bf16.msra.mxu0 0
    %1077 = vmatprep.subr.bf16.mxu0 0
    %1078 = vmatpush1.bf16.msra.mxu0 0
    %1079 = vmatprep.subr.bf16.mxu0 0
    %1080 = vmatpush1.bf16.msra.mxu0 0
    %1081 = vmatprep.subr.bf16.mxu0 0
    %1082 = vmatpush1.bf16.msra.mxu0 0
    %1083 = vmatprep.subr.bf16.mxu0 0
    %1084 = vmatpush1.bf16.msra.mxu0 0
    %1085 = vmatprep.subr.bf16.mxu0 0
    %1086 = vmatpush1.bf16.msra.mxu0 0
    %1087 = vmatprep.subr.bf16.mxu0 0
    %1088 = vmatpush1.bf16.msra.mxu0 0
    %1089 = vmatprep.subr.bf16.mxu0 0
    %1090 = vmatpush1.bf16.msra.mxu0 0
    %1091 = vmatprep.mubr.bf16.mxu0 0
    %1092 = vmatmul.mubr.bf16.gmra.mrb[0].mxu0 %v1057
    %v1093 = vpop.f32.mrb[0].mxu0
    %v1094 = vadd.f32 %v914, %v1093
    %v1095 = vpop.f32.mrb[0].mxu0
    %v1096 = vpop.f32.mrb[0].mxu0
    %v1097 = vpop.f32.mrb[0].mxu0
    %1098 = vdwg.mxu0
    %s1099 = scalar_lea.vmem %s9, 8
    %1100 = vst.msk [vmem:[%s1099] sm:$0xff] %vm971, %v1094
    // Predicated region
    $region46: #{tpu_custom_call.1} parent=1 // pred_check
      _
    $region47: #{tpu_custom_call.1} parent=1 // pred_check_branch
      %1102 = sbr.rel (0) target = $region49
    $region48: #{tpu_custom_call.1} parent=1 // pred_region
      _
    $region49: #{tpu_custom_call.1} parent=1 // pred_fallthru
      _
    // Predicated region
    $region50: #{tpu_custom_call.1} parent=1 // pred_check
      _
    $region51: #{tpu_custom_call.1} parent=1 // pred_check_branch
      %1104 = sbr.rel (0) target = $region53
    $region52: #{tpu_custom_call.1} parent=1 // pred_region
      _
    $region53: #{tpu_custom_call.1} parent=1 // pred_fallthru
      _
    %1105 = vsyncpa [#allocation7], 1
    %1106 = vsyncpa [#allocation9], 1

</llo_original>
